<compile_context>
chip_gen: v5e
topology: v5e:2x2
jax: 0.10.0
libtpu: 0.0.40
codegen_flags: <defaults>
</compile_context>

<pallas_src>
import jax
import jax.numpy as jnp
from jax.experimental import pallas as pl
from jax.experimental.pallas import tpu as pltpu


def _round_up(n, m):
    return ((n + m - 1) // m) * m


def qnetwork_kernel(
    x_ref,
    w1_ref, b1_ref,
    w2_ref, b2_ref,
    w3_ref, b3_ref,
    w4_ref, b4_ref,
    o_ref,
):
    # Cast activations to bf16 only at the MXU input; accumulate in f32 and do
    # all elementwise math (bias add, ReLU) in f32.
    x = x_ref[...].astype(jnp.bfloat16)

    h1 = jnp.maximum(
        jnp.dot(x, w1_ref[...], preferred_element_type=jnp.float32) + b1_ref[...],
        0.0)
    # Dropout(0.2) here is identity in eval mode.
    h2 = jnp.maximum(
        jnp.dot(h1.astype(jnp.bfloat16), w2_ref[...],
                preferred_element_type=jnp.float32) + b2_ref[...],
        0.0)
    h3 = jnp.maximum(
        jnp.dot(h2.astype(jnp.bfloat16), w3_ref[...],
                preferred_element_type=jnp.float32) + b3_ref[...],
        0.0)
    o_ref[...] = jnp.maximum(
        jnp.dot(h3.astype(jnp.bfloat16), w4_ref[...],
                preferred_element_type=jnp.float32) + b4_ref[...],
        0.0)


def qnetwork_forward(x, folded_params, action_size):
    """Fused eval-mode forward. x: [B, state_size] f32 -> [B, action_size] f32."""
    w1, b1, w2, b2, w3, b3, w4, b4 = folded_params

    B, S = x.shape
    A_pad = w4.shape[1]  # action dim padded to a 128 multiple (lane-dense store)

    # Batch tile: multiple of 8 (sublane), capped at 128 (fits the MXU M-tile
    # and keeps per-step VMEM tiny on every generation).
    TILE_B = 128 if B >= 128 else _round_up(B, 8)
    B_pad = _round_up(B, TILE_B)
    if B_pad != B:
        x = jnp.pad(x, ((0, B_pad - B), (0, 0)))

    grid = (B_pad // TILE_B,)
    const2 = lambda i: (0, 0)  # weights/biases: resident across batch tiles

    out = pl.pallas_call(
        qnetwork_kernel,
        out_shape=jax.ShapeDtypeStruct((B_pad, A_pad), jnp.float32),
        grid=grid,
        in_specs=[
            pl.BlockSpec((TILE_B, S), lambda i: (i, 0)),
            pl.BlockSpec(w1.shape, const2), pl.BlockSpec(b1.shape, const2),
            pl.BlockSpec(w2.shape, const2), pl.BlockSpec(b2.shape, const2),
            pl.BlockSpec(w3.shape, const2), pl.BlockSpec(b3.shape, const2),
            pl.BlockSpec(w4.shape, const2), pl.BlockSpec(b4.shape, const2),
        ],
        out_specs=pl.BlockSpec((TILE_B, A_pad), lambda i: (i, 0)),
        compiler_params=pltpu.CompilerParams(
            dimension_semantics=("parallel",),      # megacore sharding on v7x
            vmem_limit_bytes=32 * 1024 * 1024,      # explicit, well under budget
        ),
    )(x, w1, b1, w2, b2, w3, b3, w4, b4)

    return out[:B, :action_size]


def init_raw_params(key, state_size, action_size):
    """PyTorch-style raw params: per layer (W [in,out], b [out], bn-or-None)."""
    dims = [(state_size, 256), (256, 324), (324, 512), (512, action_size)]
    layers = []
    for i, (fan_in, fan_out) in enumerate(dims):
        key, kw, kb = jax.random.split(key, 3)
        bound = 1.0 / float(fan_in) ** 0.5
        w = jax.random.uniform(kw, (fan_in, fan_out), jnp.float32, -bound, bound)
        b = jax.random.uniform(kb, (fan_out,), jnp.float32, -bound, bound)
        if i < 3:  # BatchNorm1d after layers 1-3 (non-trivial stats to test the fold)
            key, kg, ke, km, kv = jax.random.split(key, 5)
            gamma = jax.random.uniform(kg, (fan_out,), jnp.float32, 0.5, 1.5)
            beta = jax.random.uniform(ke, (fan_out,), jnp.float32, -0.5, 0.5)
            mean = jax.random.uniform(km, (fan_out,), jnp.float32, -0.5, 0.5)
            var = jax.random.uniform(kv, (fan_out,), jnp.float32, 0.5, 1.5)
            bn = (gamma, beta, mean, var)
        else:
            bn = None
        layers.append((w, b, bn))
    return layers


def fold_and_pad_params(layers, eps=1e-5):
    """Fold BN into weights/bias, zero-pad out dims to 128 multiples, bf16 weights."""
    folded = []
    prev_out_pad = None
    for (w, b, bn) in layers:
        fan_in, fan_out = w.shape
        if bn is not None:
            gamma, beta, mean, var = bn
            scale = gamma / jnp.sqrt(var + eps)
            w_f = w * scale[None, :]
            b_f = (b - mean) * scale + beta
        else:
            w_f, b_f = w, b
        in_pad = prev_out_pad if prev_out_pad is not None else fan_in
        out_pad = _round_up(fan_out, 128)   # 256->256, 324->384, 512->512, A->128
        w_p = jnp.zeros((in_pad, out_pad), jnp.float32).at[:fan_in, :fan_out].set(w_f)
        b_p = jnp.zeros((1, out_pad), jnp.float32).at[0, :fan_out].set(b_f)
        folded.append(w_p.astype(jnp.bfloat16))  # MXU-native weights
        folded.append(b_p)                       # f32 bias for f32 elementwise add
        prev_out_pad = out_pad
    return tuple(folded)


def reference_forward(x, layers, eps=1e-5):
    """Plain-JAX f32 reference of the PyTorch module in eval mode."""
    h = x
    for (w, b, bn) in layers:
        z = h @ w + b
        if bn is not None:
            gamma, beta, mean, var = bn
            z = (z - mean) * gamma / jnp.sqrt(var + eps) + beta
        h = jnp.maximum(z, 0.0)   # Dropout(0.2) after layer 1 is identity in eval
    return h


if __name__ == "__main__":
    state_size = 8
    action_size = 4
    batch = 2

    key = jax.random.PRNGKey(0)
    kx, kp = jax.random.split(key)

    x = jax.random.normal(kx, (batch, state_size), jnp.float32)
    layers = init_raw_params(kp, state_size, action_size)
    folded = fold_and_pad_params(layers)

    out = qnetwork_forward(x, folded, action_size)
    out = jax.block_until_ready(out)

    ref = reference_forward(x, layers)
    assert out.shape == (batch, action_size)
    # bf16 weights/activations on the MXU with f32 accumulation -> loosened tol.
    assert jnp.allclose(out, ref, atol=2e-2, rtol=2e-2), "mismatch vs reference"

    print("KERNEL_OK")
</pallas_src>

<mosaic_0001>
module attributes {stable_mosaic.version = 11 : i64} {
  func.func @qnetwork_kernel(%arg0: i32, %arg1: memref<8x8xf32, #tpu.memory_space<vmem>>, %arg2: memref<8x256xbf16, #tpu.memory_space<vmem>>, %arg3: memref<1x256xf32, #tpu.memory_space<vmem>>, %arg4: memref<256x384xbf16, #tpu.memory_space<vmem>>, %arg5: memref<1x384xf32, #tpu.memory_space<vmem>>, %arg6: memref<384x512xbf16, #tpu.memory_space<vmem>>, %arg7: memref<1x512xf32, #tpu.memory_space<vmem>>, %arg8: memref<512x128xbf16, #tpu.memory_space<vmem>>, %arg9: memref<1x128xf32, #tpu.memory_space<vmem>>, %arg10: memref<8x128xf32, #tpu.memory_space<vmem>>) attributes {dimension_semantics = [#tpu.dimension_semantics<parallel>], iteration_bounds = array<i64: 1>, scalar_prefetch = 0 : i64, scratch_operands = 0 : i64, tpu.core_type = #tpu.core_type<tc>, window_params = [{transform_indices = @transform_0, window_bounds = array<i64: 8, 8>}, {pipeline_mode = #tpu.pipeline_mode<synchronous>, transform_indices = @transform_1, window_bounds = array<i64: 8, 256>}, {pipeline_mode = #tpu.pipeline_mode<synchronous>, transform_indices = @transform_2, window_bounds = array<i64: 1, 256>}, {pipeline_mode = #tpu.pipeline_mode<synchronous>, transform_indices = @transform_3, window_bounds = array<i64: 256, 384>}, {pipeline_mode = #tpu.pipeline_mode<synchronous>, transform_indices = @transform_4, window_bounds = array<i64: 1, 384>}, {pipeline_mode = #tpu.pipeline_mode<synchronous>, transform_indices = @transform_5, window_bounds = array<i64: 384, 512>}, {pipeline_mode = #tpu.pipeline_mode<synchronous>, transform_indices = @transform_6, window_bounds = array<i64: 1, 512>}, {pipeline_mode = #tpu.pipeline_mode<synchronous>, transform_indices = @transform_7, window_bounds = array<i64: 512, 128>}, {pipeline_mode = #tpu.pipeline_mode<synchronous>, transform_indices = @transform_8, window_bounds = array<i64: 1, 128>}, {transform_indices = @transform_9, window_bounds = array<i64: 8, 128>}]} {
    %c0 = arith.constant 0 : index
    %c0_0 = arith.constant 0 : index
    %0 = vector.load %arg1[%c0, %c0_0] : memref<8x8xf32, #tpu.memory_space<vmem>>, vector<8x8xf32>
    %1 = arith.truncf %0 : vector<8x8xf32> to vector<8x8xbf16>
    %c0_1 = arith.constant 0 : index
    %c0_2 = arith.constant 0 : index
    %2 = vector.load %arg2[%c0_1, %c0_2] : memref<8x256xbf16, #tpu.memory_space<vmem>>, vector<8x256xbf16>
    %cst = arith.constant dense<0.000000e+00> : vector<8x256xf32>
    %3 = tpu.matmul %1, %2, %cst {dimension_numbers = #tpu.dot_dimension_numbers<[1], [0], [0], [1], [0, 0, 1, 1], [], []>} : vector<8x8xbf16>, vector<8x256xbf16>, vector<8x256xf32> -> vector<8x256xf32>
    %c0_3 = arith.constant 0 : index
    %c0_4 = arith.constant 0 : index
    %4 = vector.load %arg3[%c0_3, %c0_4] : memref<1x256xf32, #tpu.memory_space<vmem>>, vector<1x256xf32>
    %5 = vector.broadcast %4 : vector<1x256xf32> to vector<8x256xf32>
    %6 = arith.addf %3, %5 : vector<8x256xf32>
    %cst_5 = arith.constant 0.000000e+00 : f32
    %7 = vector.broadcast %cst_5 : f32 to vector<8x256xf32>
    %8 = arith.maximumf %6, %7 : vector<8x256xf32>
    %9 = arith.truncf %8 : vector<8x256xf32> to vector<8x256xbf16>
    %c0_6 = arith.constant 0 : index
    %c0_7 = arith.constant 0 : index
    %10 = vector.load %arg4[%c0_6, %c0_7] : memref<256x384xbf16, #tpu.memory_space<vmem>>, vector<256x384xbf16>
    %cst_8 = arith.constant dense<0.000000e+00> : vector<8x384xf32>
    %11 = tpu.matmul %9, %10, %cst_8 {dimension_numbers = #tpu.dot_dimension_numbers<[1], [0], [0], [1], [0, 0, 1, 1], [], []>} : vector<8x256xbf16>, vector<256x384xbf16>, vector<8x384xf32> -> vector<8x384xf32>
    %c0_9 = arith.constant 0 : index
    %c0_10 = arith.constant 0 : index
    %12 = vector.load %arg5[%c0_9, %c0_10] : memref<1x384xf32, #tpu.memory_space<vmem>>, vector<1x384xf32>
    %13 = vector.broadcast %12 : vector<1x384xf32> to vector<8x384xf32>
    %14 = arith.addf %11, %13 : vector<8x384xf32>
    %cst_11 = arith.constant 0.000000e+00 : f32
    %15 = vector.broadcast %cst_11 : f32 to vector<8x384xf32>
    %16 = arith.maximumf %14, %15 : vector<8x384xf32>
    %17 = arith.truncf %16 : vector<8x384xf32> to vector<8x384xbf16>
    %c0_12 = arith.constant 0 : index
    %c0_13 = arith.constant 0 : index
    %18 = vector.load %arg6[%c0_12, %c0_13] : memref<384x512xbf16, #tpu.memory_space<vmem>>, vector<384x512xbf16>
    %cst_14 = arith.constant dense<0.000000e+00> : vector<8x512xf32>
    %19 = tpu.matmul %17, %18, %cst_14 {dimension_numbers = #tpu.dot_dimension_numbers<[1], [0], [0], [1], [0, 0, 1, 1], [], []>} : vector<8x384xbf16>, vector<384x512xbf16>, vector<8x512xf32> -> vector<8x512xf32>
    %c0_15 = arith.constant 0 : index
    %c0_16 = arith.constant 0 : index
    %20 = vector.load %arg7[%c0_15, %c0_16] : memref<1x512xf32, #tpu.memory_space<vmem>>, vector<1x512xf32>
    %21 = vector.broadcast %20 : vector<1x512xf32> to vector<8x512xf32>
    %22 = arith.addf %19, %21 : vector<8x512xf32>
    %cst_17 = arith.constant 0.000000e+00 : f32
    %23 = vector.broadcast %cst_17 : f32 to vector<8x512xf32>
    %24 = arith.maximumf %22, %23 : vector<8x512xf32>
    %25 = arith.truncf %24 : vector<8x512xf32> to vector<8x512xbf16>
    %c0_18 = arith.constant 0 : index
    %c0_19 = arith.constant 0 : index
    %26 = vector.load %arg8[%c0_18, %c0_19] : memref<512x128xbf16, #tpu.memory_space<vmem>>, vector<512x128xbf16>
    %cst_20 = arith.constant dense<0.000000e+00> : vector<8x128xf32>
    %27 = tpu.matmul %25, %26, %cst_20 {dimension_numbers = #tpu.dot_dimension_numbers<[1], [0], [0], [1], [0, 0, 1, 1], [], []>} : vector<8x512xbf16>, vector<512x128xbf16>, vector<8x128xf32> -> vector<8x128xf32>
    %c0_21 = arith.constant 0 : index
    %c0_22 = arith.constant 0 : index
    %28 = vector.load %arg9[%c0_21, %c0_22] : memref<1x128xf32, #tpu.memory_space<vmem>>, vector<1x128xf32>
    %29 = vector.broadcast %28 : vector<1x128xf32> to vector<8x128xf32>
    %30 = arith.addf %27, %29 : vector<8x128xf32>
    %cst_23 = arith.constant 0.000000e+00 : f32
    %31 = vector.broadcast %cst_23 : f32 to vector<8x128xf32>
    %32 = arith.maximumf %30, %31 : vector<8x128xf32>
    %c0_24 = arith.constant 0 : index
    %c0_25 = arith.constant 0 : index
    %33 = vector.load %arg10[%c0_24, %c0_25] : memref<8x128xf32, #tpu.memory_space<vmem>>, vector<8x128xf32>
    tpu.vector_store %arg10[%c0_24, %c0_25], %32 {strides = array<i32>} : memref<8x128xf32, #tpu.memory_space<vmem>>, vector<8x128xf32>,
    return
  }
  func.func @transform_0(%arg0: i32) -> (i32, i32) {
    %c0_i32 = arith.constant 0 : i32
    %c0_i32_0 = arith.constant 0 : i32
    return %arg0, %c0_i32 : i32, i32
  }
  func.func @transform_1(%arg0: i32) -> (i32, i32) {
    %c0_i32 = arith.constant 0 : i32
    %c0_i32_0 = arith.constant 0 : i32
    %c0_i32_1 = arith.constant 0 : i32
    return %c0_i32, %c0_i32_0 : i32, i32
  }
  func.func @transform_2(%arg0: i32) -> (i32, i32) {
    %c0_i32 = arith.constant 0 : i32
    %c0_i32_0 = arith.constant 0 : i32
    %c0_i32_1 = arith.constant 0 : i32
    return %c0_i32, %c0_i32_0 : i32, i32
  }
  func.func @transform_3(%arg0: i32) -> (i32, i32) {
    %c0_i32 = arith.constant 0 : i32
    %c0_i32_0 = arith.constant 0 : i32
    %c0_i32_1 = arith.constant 0 : i32
    return %c0_i32, %c0_i32_0 : i32, i32
  }
  func.func @transform_4(%arg0: i32) -> (i32, i32) {
    %c0_i32 = arith.constant 0 : i32
    %c0_i32_0 = arith.constant 0 : i32
    %c0_i32_1 = arith.constant 0 : i32
    return %c0_i32, %c0_i32_0 : i32, i32
  }
  func.func @transform_5(%arg0: i32) -> (i32, i32) {
    %c0_i32 = arith.constant 0 : i32
    %c0_i32_0 = arith.constant 0 : i32
    %c0_i32_1 = arith.constant 0 : i32
    return %c0_i32, %c0_i32_0 : i32, i32
  }
  func.func @transform_6(%arg0: i32) -> (i32, i32) {
    %c0_i32 = arith.constant 0 : i32
    %c0_i32_0 = arith.constant 0 : i32
    %c0_i32_1 = arith.constant 0 : i32
    return %c0_i32, %c0_i32_0 : i32, i32
  }
  func.func @transform_7(%arg0: i32) -> (i32, i32) {
    %c0_i32 = arith.constant 0 : i32
    %c0_i32_0 = arith.constant 0 : i32
    %c0_i32_1 = arith.constant 0 : i32
    return %c0_i32, %c0_i32_0 : i32, i32
  }
  func.func @transform_8(%arg0: i32) -> (i32, i32) {
    %c0_i32 = arith.constant 0 : i32
    %c0_i32_0 = arith.constant 0 : i32
    %c0_i32_1 = arith.constant 0 : i32
    return %c0_i32, %c0_i32_0 : i32, i32
  }
  func.func @transform_9(%arg0: i32) -> (i32, i32) {
    %c0_i32 = arith.constant 0 : i32
    %c0_i32_0 = arith.constant 0 : i32
    return %arg0, %c0_i32 : i32, i32
  }
}

</mosaic_0001>

<llo_original>
// kernel: tpu_custom_call.1
$region0: #{tpu_custom_call.1}
  #allocation0 [shape = 'u32[]', space=smem, size = 0x4, offset = 0x4, fixed_abs, tag = 'smem constant byte address 0x4 - core index']
  #allocation1 [shape = 'u32[72,128]{1,0:T(1,128)}', space=vmem, size = 0x9000, scoped, tag = 'internal scratch']
  %s0 = inlined_call_operand.hbm [shape: f32[8,8], index: 0, kind: input, shape index: {}]
  %s1 = inlined_call_operand.hbm [shape: bf16[8,256], index: 1, kind: input, shape index: {}]
  %s2 = inlined_call_operand.hbm [shape: f32[1,256], index: 2, kind: input, shape index: {}]
  %s3 = inlined_call_operand.hbm [shape: bf16[256,384], index: 3, kind: input, shape index: {}]
  %s4 = inlined_call_operand.hbm [shape: f32[1,384], index: 4, kind: input, shape index: {}]
  %s5 = inlined_call_operand.hbm [shape: bf16[384,512], index: 5, kind: input, shape index: {}]
  %s6 = inlined_call_operand.vmem [shape: f32[1,512], index: 6, kind: input, shape index: {}]
  %s7 = inlined_call_operand.hbm [shape: bf16[512,128], index: 7, kind: input, shape index: {}]
  %s8 = inlined_call_operand.vmem [shape: f32[1,128], index: 8, kind: input, shape index: {}]
  %s9 = inlined_call_operand.hbm [shape: f32[8,128], index: 9, kind: output, shape index: {}]
  %s10 = sld [smem:[#allocation0]]
  $region74: #{tpu_custom_call.1} parent=0
    _
  %s12 = ssub.s32 1, %s10
  %s13 = scalar_select 0, %s12, %s10
  $region1: #{tpu_custom_call.1} parent=0
    #allocation2 [shape = 'u8[4096]{0}', space=vmem, size = 0x1000, scoped, tag = 'input window, operand 0, single buffered']
    #allocation3 [shape = 's32[1]{0}', space=sflag, size = 0x4, scoped, tag = 'scoped memory for tpu_custom_call.1']
    #allocation4 [shape = 's32[1]{0}', space=sflag, size = 0x4, scoped, tag = 'scoped memory for tpu_custom_call.1']
    #allocation5 [shape = 'u8[4096]{0}', space=vmem, size = 0x1000, scoped, tag = 'input window, operand 1, single buffered']
    #allocation6 [shape = 's32[1]{0}', space=sflag, size = 0x4, scoped, tag = 'scoped memory for tpu_custom_call.1']
    #allocation7 [shape = 'u8[1024]{0}', space=vmem, size = 0x400, scoped, tag = 'input window, operand 2, single buffered']
    #allocation8 [shape = 'u8[196608]{0}', space=vmem, size = 0x30000, scoped, tag = 'input window, operand 3, single buffered']
    #allocation9 [shape = 's32[1]{0}', space=sflag, size = 0x4, scoped, tag = 'scoped memory for tpu_custom_call.1']
    #allocation10 [shape = 'u8[1536]{0}', space=vmem, size = 0x800, scoped, tag = 'input window, operand 4, single buffered']
    #allocation11 [shape = 'u8[393216]{0}', space=vmem, size = 0x60000, scoped, tag = 'input window, operand 5, single buffered']
    #allocation12 [shape = 's32[1]{0}', space=sflag, size = 0x4, scoped, tag = 'scoped memory for tpu_custom_call.1']
    #allocation13 [shape = 'u8[131072]{0}', space=vmem, size = 0x20000, scoped, tag = 'input window, operand 7, single buffered']
    #allocation14 [shape = 'u8[4096]{0}', space=vmem, size = 0x1000, scoped, tag = 'output window, operand 0, single buffered']
    %14 = vsyncpa [#allocation3], 0
    %15 = vsyncpa [#allocation6], 0
    %16 = vsyncpa [#allocation9], 0
    %17 = vsyncpa [#allocation12], 0
    %18 = vsyncpa [#allocation4], 0
    // Predicated region
    $region2: #{tpu_custom_call.1} parent=1 // pred_check
      _
    $region3: #{tpu_custom_call.1} parent=1 // pred_check_branch
      %20 = sbr.rel (0) target = $region5
    $region4: #{tpu_custom_call.1} parent=1 // pred_region
      %22 = vsyncadd [#allocation3], 0
      %s24 = sshll.u32 %s0, 4
      %s25 = int_to_ptr.hbm [resolvable:$true] %s24
      %s26 = sshll.u32 [#allocation2], 4
      %s27 = int_to_ptr.vmem [resolvable:$true] %s26
      %29 = dma.hbm_to_vmem [thread:$0]  %s25, 128, %s27, [#allocation3]
    $region5: #{tpu_custom_call.1} parent=1 // pred_fallthru
      _
    // Predicated region
    $region6: #{tpu_custom_call.1} parent=1 // pred_check
      _
    $region7: #{tpu_custom_call.1} parent=1 // pred_check_branch
      %31 = sbr.rel (0) target = $region9
    $region8: #{tpu_custom_call.1} parent=1 // pred_region
      %33 = vsyncadd [#allocation6], 0
      %s35 = sshll.u32 %s1, 4
      %s36 = int_to_ptr.hbm [resolvable:$true] %s35
      %s37 = sshll.u32 [#allocation5], 4
      %s38 = int_to_ptr.vmem [resolvable:$true] %s37
      %40 = dma.hbm_to_vmem [thread:$0]  %s36, 128, %s38, [#allocation6]
    $region9: #{tpu_custom_call.1} parent=1 // pred_fallthru
      _
    // Predicated region
    $region10: #{tpu_custom_call.1} parent=1 // pred_check
      _
    $region11: #{tpu_custom_call.1} parent=1 // pred_check_branch
      %42 = sbr.rel (0) target = $region13
    $region12: #{tpu_custom_call.1} parent=1 // pred_region
      %44 = vsyncadd [#allocation6], 0
      %s46 = sshll.u32 %s2, 4
      %s47 = int_to_ptr.hbm [resolvable:$true] %s46
      %s48 = sshll.u32 [#allocation7], 4
      %s49 = int_to_ptr.vmem [resolvable:$true] %s48
      %51 = dma.hbm_to_vmem [thread:$0]  %s47, 32, %s49, [#allocation6]
    $region13: #{tpu_custom_call.1} parent=1 // pred_fallthru
      _
    // Predicated region
    $region14: #{tpu_custom_call.1} parent=1 // pred_check
      _
    $region15: #{tpu_custom_call.1} parent=1 // pred_check_branch
      %53 = sbr.rel (0) target = $region17
    $region16: #{tpu_custom_call.1} parent=1 // pred_region
      %55 = vsyncadd [#allocation9], 0
      %s56 = sshll.u32 %s3, 4
      %s57 = int_to_ptr.hbm [resolvable:$true] %s56
      %s58 = sshll.u32 [#allocation8], 4
      %s59 = int_to_ptr.vmem [resolvable:$true] %s58
      %64 = dma.hbm_to_vmem [thread:$0]  %s57, 6144, %s59, [#allocation9], 192, 192, 12
    $region17: #{tpu_custom_call.1} parent=1 // pred_fallthru
      _
    // Predicated region
    $region18: #{tpu_custom_call.1} parent=1 // pred_check
      _
    $region19: #{tpu_custom_call.1} parent=1 // pred_check_branch
      %66 = sbr.rel (0) target = $region21
    $region20: #{tpu_custom_call.1} parent=1 // pred_region
      %68 = vsyncadd [#allocation9], 0
      %s70 = sshll.u32 %s4, 4
      %s71 = int_to_ptr.hbm [resolvable:$true] %s70
      %s72 = sshll.u32 [#allocation10], 4
      %s73 = int_to_ptr.vmem [resolvable:$true] %s72
      %75 = dma.hbm_to_vmem [thread:$0]  %s71, 48, %s73, [#allocation9]
    $region21: #{tpu_custom_call.1} parent=1 // pred_fallthru
      _
    // Predicated region
    $region22: #{tpu_custom_call.1} parent=1 // pred_check
      _
    $region23: #{tpu_custom_call.1} parent=1 // pred_check_branch
      %77 = sbr.rel (0) target = $region25
    $region24: #{tpu_custom_call.1} parent=1 // pred_region
      %79 = vsyncadd [#allocation12], 0
      %s80 = sshll.u32 %s5, 4
      %s81 = int_to_ptr.hbm [resolvable:$true] %s80
      %s82 = sshll.u32 [#allocation11], 4
      %s83 = int_to_ptr.vmem [resolvable:$true] %s82
      %88 = dma.hbm_to_vmem [thread:$0]  %s81, 12288, %s83, [#allocation12], 256, 256, 16
    $region25: #{tpu_custom_call.1} parent=1 // pred_fallthru
      _
    // Predicated region
    $region26: #{tpu_custom_call.1} parent=1 // pred_check
      _
    $region27: #{tpu_custom_call.1} parent=1 // pred_check_branch
      %90 = sbr.rel (0) target = $region29
    $region28: #{tpu_custom_call.1} parent=1 // pred_region
      _
    $region29: #{tpu_custom_call.1} parent=1 // pred_fallthru
      _
    // Predicated region
    $region30: #{tpu_custom_call.1} parent=1 // pred_check
      _
    $region31: #{tpu_custom_call.1} parent=1 // pred_check_branch
      %92 = sbr.rel (0) target = $region33
    $region32: #{tpu_custom_call.1} parent=1 // pred_region
      %94 = vsyncadd [#allocation12], 0
      %s95 = sshll.u32 %s7, 4
      %s96 = int_to_ptr.hbm [resolvable:$true] %s95
      %s97 = sshll.u32 [#allocation13], 4
      %s98 = int_to_ptr.vmem [resolvable:$true] %s97
      %103 = dma.hbm_to_vmem [thread:$0]  %s96, 4096, %s98, [#allocation12], 64, 64, 4
    $region33: #{tpu_custom_call.1} parent=1 // pred_fallthru
      _
    // Predicated region
    $region34: #{tpu_custom_call.1} parent=1 // pred_check
      _
    $region35: #{tpu_custom_call.1} parent=1 // pred_check_branch
      %105 = sbr.rel (0) target = $region37
    $region36: #{tpu_custom_call.1} parent=1 // pred_region
      _
    $region37: #{tpu_custom_call.1} parent=1 // pred_fallthru
      _
    // Predicated region
    $region38: #{tpu_custom_call.1} parent=1 // pred_check
      _
    $region39: #{tpu_custom_call.1} parent=1 // pred_check_branch
      %107 = sbr.rel (0) target = $region41
    $region40: #{tpu_custom_call.1} parent=1 // pred_region
      %109 = dma.done [#allocation3], 128
    $region41: #{tpu_custom_call.1} parent=1 // pred_fallthru
      _
    // Predicated region
    $region42: #{tpu_custom_call.1} parent=1 // pred_check
      _
    $region43: #{tpu_custom_call.1} parent=1 // pred_check_branch
      %111 = sbr.rel (0) target = $region45
    $region44: #{tpu_custom_call.1} parent=1 // pred_region
      %113 = dma.done [#allocation6], 128
    $region45: #{tpu_custom_call.1} parent=1 // pred_fallthru
      _
    // Predicated region
    $region46: #{tpu_custom_call.1} parent=1 // pred_check
      _
    $region47: #{tpu_custom_call.1} parent=1 // pred_check_branch
      %115 = sbr.rel (0) target = $region49
    $region48: #{tpu_custom_call.1} parent=1 // pred_region
      %117 = dma.done [#allocation6], 32
    $region49: #{tpu_custom_call.1} parent=1 // pred_fallthru
      _
    // Predicated region
    $region50: #{tpu_custom_call.1} parent=1 // pred_check
      _
    $region51: #{tpu_custom_call.1} parent=1 // pred_check_branch
      %119 = sbr.rel (0) target = $region53
    $region52: #{tpu_custom_call.1} parent=1 // pred_region
      %121 = dma.done [#allocation9], 6144
    $region53: #{tpu_custom_call.1} parent=1 // pred_fallthru
      _
    // Predicated region
    $region54: #{tpu_custom_call.1} parent=1 // pred_check
      _
    $region55: #{tpu_custom_call.1} parent=1 // pred_check_branch
      %123 = sbr.rel (0) target = $region57
    $region56: #{tpu_custom_call.1} parent=1 // pred_region
      %125 = dma.done [#allocation9], 48
    $region57: #{tpu_custom_call.1} parent=1 // pred_fallthru
      _
    // Predicated region
    $region58: #{tpu_custom_call.1} parent=1 // pred_check
      _
    $region59: #{tpu_custom_call.1} parent=1 // pred_check_branch
      %127 = sbr.rel (0) target = $region61
    $region60: #{tpu_custom_call.1} parent=1 // pred_region
      %129 = dma.done [#allocation12], 12288
    $region61: #{tpu_custom_call.1} parent=1 // pred_fallthru
      _
    // Predicated region
    $region62: #{tpu_custom_call.1} parent=1 // pred_check
      _
    $region63: #{tpu_custom_call.1} parent=1 // pred_check_branch
      %131 = sbr.rel (0) target = $region65
    $region64: #{tpu_custom_call.1} parent=1 // pred_region
      %133 = dma.done [#allocation12], 4096
    $region65: #{tpu_custom_call.1} parent=1 // pred_fallthru
      _
    %v135 = vld [vmem:[#allocation2] sm:$0xff]
    %v136 = vpack.c.bf16 %v135, %v135
    %v137 = vld [vmem:[#allocation5] sm:$0xff]
    %v138 = vld [vmem:[#allocation7] sm:$0x3]
    %v140 = vperm.slane %v138, 0
    %v141 = vperm.slane %v138, 1
    %v145 = vunpack.c.l.b16 %v137
    %v146 = vunpack.c.h.b16 %v137
    %v147 = vpack.c.b16 %v145, %v145
    %v148 = vpack.c.b16 %v146, %v146
    %vm149 = vcmask 64512
    %v151 = vsel %vm149, %v136, 0
    %vm153 = vcmask 1043456
    %v155 = vsel %vm153, %v147, 0
    %v158 = vsel %vm153, %v148, 0
    %160 = vmatpush.bf16.msra.mxu0 0
    %161 = vmatpush.bf16.msra.mxu0 0
    %162 = vmatpush.bf16.msra.mxu0 0
    %163 = vmatpush.bf16.msra.mxu0 0
    %164 = vmatpush.bf16.msra.mxu0 0
    %165 = vmatpush.bf16.msra.mxu0 0
    %166 = vmatpush.bf16.msra.mxu0 0
    %167 = vmatpush.bf16.msra.mxu0 %v155
    %168 = vmatmul.bf16.gmra.mxu0 %v151
    %v169 = vpop.f32.mrf.mxu0
    %v170 = vadd.f32 %v140, %v169
    %v171 = vpop.f32.mrf.mxu0
    %172 = vdwg.mxu0
    %173 = vmatpush.bf16.msra.mxu0 0
    %174 = vmatpush.bf16.msra.mxu0 0
    %175 = vmatpush.bf16.msra.mxu0 0
    %176 = vmatpush.bf16.msra.mxu0 0
    %177 = vmatpush.bf16.msra.mxu0 0
    %178 = vmatpush.bf16.msra.mxu0 0
    %179 = vmatpush.bf16.msra.mxu0 0
    %180 = vmatpush.bf16.msra.mxu0 %v158
    %181 = vmatmul.bf16.gmra.mxu0 %v151
    %v182 = vpop.f32.mrf.mxu0
    %v183 = vadd.f32 %v141, %v182
    %v184 = vpop.f32.mrf.mxu0
    %185 = vdwg.mxu0
    %v186 = vmax.f32 %v170, 0.0
    %v187 = vmax.f32 %v183, 0.0
    %v188 = vpack.c.bf16 %v186, %v186
    %v189 = vpack.c.bf16 %v187, %v187
    %v190 = vld [vmem:[#allocation8] sm:$0xff]
    %v191 = vld [vmem:[#allocation8 + $0x8] sm:$0xf]
    %v192 = vld [vmem:[#allocation8 + $0xc] sm:$0xff]
    %v193 = vld [vmem:[#allocation8 + $0x14] sm:$0xf]
    %v194 = vld [vmem:[#allocation8 + $0x18] sm:$0xff]
    %v195 = vld [vmem:[#allocation8 + $0x20] sm:$0xf]
    %v196 = vld [vmem:[#allocation8 + $0x24] sm:$0xff]
    %v197 = vld [vmem:[#allocation8 + $0x2c] sm:$0xf]
    %v198 = vld [vmem:[#allocation8 + $0x30] sm:$0xff]
    %v199 = vld [vmem:[#allocation8 + $0x38] sm:$0xf]
    %v200 = vld [vmem:[#allocation8 + $0x3c] sm:$0xff]
    %v201 = vld [vmem:[#allocation8 + $0x44] sm:$0xf]
    %v202 = vld [vmem:[#allocation8 + $0x48] sm:$0xff]
    %v203 = vld [vmem:[#allocation8 + $0x50] sm:$0xf]
    %v204 = vld [vmem:[#allocation8 + $0x54] sm:$0xff]
    %v205 = vld [vmem:[#allocation8 + $0x5c] sm:$0xf]
    %v206 = vld [vmem:[#allocation8 + $0x60] sm:$0xff]
    %v207 = vld [vmem:[#allocation8 + $0x68] sm:$0xf]
    %v208 = vld [vmem:[#allocation8 + $0x6c] sm:$0xff]
    %v209 = vld [vmem:[#allocation8 + $0x74] sm:$0xf]
    %v210 = vld [vmem:[#allocation8 + $0x78] sm:$0xff]
    %v211 = vld [vmem:[#allocation8 + $0x80] sm:$0xf]
    %v212 = vld [vmem:[#allocation8 + $0x84] sm:$0xff]
    %v213 = vld [vmem:[#allocation8 + $0x8c] sm:$0xf]
    %v214 = vld [vmem:[#allocation8 + $0x90] sm:$0xff]
    %v215 = vld [vmem:[#allocation8 + $0x98] sm:$0xf]
    %v216 = vld [vmem:[#allocation8 + $0x9c] sm:$0xff]
    %v217 = vld [vmem:[#allocation8 + $0xa4] sm:$0xf]
    %v218 = vld [vmem:[#allocation8 + $0xa8] sm:$0xff]
    %v219 = vld [vmem:[#allocation8 + $0xb0] sm:$0xf]
    %v220 = vld [vmem:[#allocation8 + $0xb4] sm:$0xff]
    %v221 = vld [vmem:[#allocation8 + $0xbc] sm:$0xf]
    %v222 = vld [vmem:[#allocation8 + $0xc0] sm:$0xff]
    %v223 = vld [vmem:[#allocation8 + $0xc8] sm:$0xf]
    %v224 = vld [vmem:[#allocation8 + $0xcc] sm:$0xff]
    %v225 = vld [vmem:[#allocation8 + $0xd4] sm:$0xf]
    %v226 = vld [vmem:[#allocation8 + $0xd8] sm:$0xff]
    %v227 = vld [vmem:[#allocation8 + $0xe0] sm:$0xf]
    %v228 = vld [vmem:[#allocation8 + $0xe4] sm:$0xff]
    %v229 = vld [vmem:[#allocation8 + $0xec] sm:$0xf]
    %v230 = vld [vmem:[#allocation8 + $0xf0] sm:$0xff]
    %v231 = vld [vmem:[#allocation8 + $0xf8] sm:$0xf]
    %v232 = vld [vmem:[#allocation8 + $0xfc] sm:$0xff]
    %v233 = vld [vmem:[#allocation8 + $0x104] sm:$0xf]
    %v234 = vld [vmem:[#allocation8 + $0x108] sm:$0xff]
    %v235 = vld [vmem:[#allocation8 + $0x110] sm:$0xf]
    %v236 = vld [vmem:[#allocation8 + $0x114] sm:$0xff]
    %v237 = vld [vmem:[#allocation8 + $0x11c] sm:$0xf]
    %v238 = vld [vmem:[#allocation8 + $0x120] sm:$0xff]
    %v239 = vld [vmem:[#allocation8 + $0x128] sm:$0xf]
    %v240 = vld [vmem:[#allocation8 + $0x12c] sm:$0xff]
    %v241 = vld [vmem:[#allocation8 + $0x134] sm:$0xf]
    %v242 = vld [vmem:[#allocation8 + $0x138] sm:$0xff]
    %v243 = vld [vmem:[#allocation8 + $0x140] sm:$0xf]
    %v244 = vld [vmem:[#allocation8 + $0x144] sm:$0xff]
    %v245 = vld [vmem:[#allocation8 + $0x14c] sm:$0xf]
    %v246 = vld [vmem:[#allocation8 + $0x150] sm:$0xff]
    %v247 = vld [vmem:[#allocation8 + $0x158] sm:$0xf]
    %v248 = vld [vmem:[#allocation8 + $0x15c] sm:$0xff]
    %v249 = vld [vmem:[#allocation8 + $0x164] sm:$0xf]
    %v250 = vld [vmem:[#allocation8 + $0x168] sm:$0xff]
    %v251 = vld [vmem:[#allocation8 + $0x170] sm:$0xf]
    %v252 = vld [vmem:[#allocation8 + $0x174] sm:$0xff]
    %v253 = vld [vmem:[#allocation8 + $0x17c] sm:$0xf]
    %v254 = vld [vmem:[#allocation10] sm:$0x7]
    %v256 = vperm.slane %v254, 0
    %v257 = vperm.slane %v254, 1
    %v258 = vperm.slane %v254, 2
    %v326 = vunpack.c.l.b16 %v190
    %v327 = vunpack.c.h.b16 %v190
    %v328 = vunpack.c.l.b16 %v191
    %v329 = vunpack.c.l.b16 %v192
    %v330 = vunpack.c.h.b16 %v192
    %v331 = vunpack.c.l.b16 %v193
    %v332 = vunpack.c.l.b16 %v194
    %v333 = vunpack.c.h.b16 %v194
    %v334 = vunpack.c.l.b16 %v195
    %v335 = vunpack.c.l.b16 %v196
    %v336 = vunpack.c.h.b16 %v196
    %v337 = vunpack.c.l.b16 %v197
    %v338 = vunpack.c.l.b16 %v198
    %v339 = vunpack.c.h.b16 %v198
    %v340 = vunpack.c.l.b16 %v199
    %v341 = vunpack.c.l.b16 %v200
    %v342 = vunpack.c.h.b16 %v200
    %v343 = vunpack.c.l.b16 %v201
    %v344 = vunpack.c.l.b16 %v202
    %v345 = vunpack.c.h.b16 %v202
    %v346 = vunpack.c.l.b16 %v203
    %v347 = vunpack.c.l.b16 %v204
    %v348 = vunpack.c.h.b16 %v204
    %v349 = vunpack.c.l.b16 %v205
    %v350 = vunpack.c.l.b16 %v206
    %v351 = vunpack.c.h.b16 %v206
    %v352 = vunpack.c.l.b16 %v207
    %v353 = vunpack.c.l.b16 %v208
    %v354 = vunpack.c.h.b16 %v208
    %v355 = vunpack.c.l.b16 %v209
    %v356 = vunpack.c.l.b16 %v210
    %v357 = vunpack.c.h.b16 %v210
    %v358 = vunpack.c.l.b16 %v211
    %v359 = vunpack.c.l.b16 %v212
    %v360 = vunpack.c.h.b16 %v212
    %v361 = vunpack.c.l.b16 %v213
    %v362 = vunpack.c.l.b16 %v214
    %v363 = vunpack.c.h.b16 %v214
    %v364 = vunpack.c.l.b16 %v215
    %v365 = vunpack.c.l.b16 %v216
    %v366 = vunpack.c.h.b16 %v216
    %v367 = vunpack.c.l.b16 %v217
    %v368 = vunpack.c.l.b16 %v218
    %v369 = vunpack.c.h.b16 %v218
    %v370 = vunpack.c.l.b16 %v219
    %v371 = vunpack.c.l.b16 %v220
    %v372 = vunpack.c.h.b16 %v220
    %v373 = vunpack.c.l.b16 %v221
    %v374 = vunpack.c.l.b16 %v222
    %v375 = vunpack.c.h.b16 %v222
    %v376 = vunpack.c.l.b16 %v223
    %v377 = vunpack.c.l.b16 %v224
    %v378 = vunpack.c.h.b16 %v224
    %v379 = vunpack.c.l.b16 %v225
    %v380 = vunpack.c.l.b16 %v226
    %v381 = vunpack.c.h.b16 %v226
    %v382 = vunpack.c.l.b16 %v227
    %v383 = vunpack.c.l.b16 %v228
    %v384 = vunpack.c.h.b16 %v228
    %v385 = vunpack.c.l.b16 %v229
    %v386 = vunpack.c.l.b16 %v230
    %v387 = vunpack.c.h.b16 %v230
    %v388 = vunpack.c.l.b16 %v231
    %v389 = vunpack.c.l.b16 %v232
    %v390 = vunpack.c.h.b16 %v232
    %v391 = vunpack.c.l.b16 %v233
    %v392 = vunpack.c.l.b16 %v234
    %v393 = vunpack.c.h.b16 %v234
    %v394 = vunpack.c.l.b16 %v235
    %v395 = vunpack.c.l.b16 %v236
    %v396 = vunpack.c.h.b16 %v236
    %v397 = vunpack.c.l.b16 %v237
    %v398 = vunpack.c.l.b16 %v238
    %v399 = vunpack.c.h.b16 %v238
    %v400 = vunpack.c.l.b16 %v239
    %v401 = vunpack.c.l.b16 %v240
    %v402 = vunpack.c.h.b16 %v240
    %v403 = vunpack.c.l.b16 %v241
    %v404 = vunpack.c.l.b16 %v242
    %v405 = vunpack.c.h.b16 %v242
    %v406 = vunpack.c.l.b16 %v243
    %v407 = vunpack.c.l.b16 %v244
    %v408 = vunpack.c.h.b16 %v244
    %v409 = vunpack.c.l.b16 %v245
    %v410 = vunpack.c.l.b16 %v246
    %v411 = vunpack.c.h.b16 %v246
    %v412 = vunpack.c.l.b16 %v247
    %v413 = vunpack.c.l.b16 %v248
    %v414 = vunpack.c.h.b16 %v248
    %v415 = vunpack.c.l.b16 %v249
    %v416 = vunpack.c.l.b16 %v250
    %v417 = vunpack.c.h.b16 %v250
    %v418 = vunpack.c.l.b16 %v251
    %v419 = vunpack.c.l.b16 %v252
    %v420 = vunpack.c.h.b16 %v252
    %v421 = vunpack.c.l.b16 %v253
    %v422 = vpack.c.b16 %v329, %v326
    %v423 = vpack.c.b16 %v330, %v327
    %v424 = vpack.c.b16 %v331, %v328
    %v425 = vpack.c.b16 %v335, %v332
    %v426 = vpack.c.b16 %v336, %v333
    %v427 = vpack.c.b16 %v337, %v334
    %v428 = vpack.c.b16 %v341, %v338
    %v429 = vpack.c.b16 %v342, %v339
    %v430 = vpack.c.b16 %v343, %v340
    %v431 = vpack.c.b16 %v347, %v344
    %v432 = vpack.c.b16 %v348, %v345
    %v433 = vpack.c.b16 %v349, %v346
    %v434 = vpack.c.b16 %v353, %v350
    %v435 = vpack.c.b16 %v354, %v351
    %v436 = vpack.c.b16 %v355, %v352
    %v437 = vpack.c.b16 %v359, %v356
    %v438 = vpack.c.b16 %v360, %v357
    %v439 = vpack.c.b16 %v361, %v358
    %v440 = vpack.c.b16 %v365, %v362
    %v441 = vpack.c.b16 %v366, %v363
    %v442 = vpack.c.b16 %v367, %v364
    %v443 = vpack.c.b16 %v371, %v368
    %v444 = vpack.c.b16 %v372, %v369
    %v445 = vpack.c.b16 %v373, %v370
    %v446 = vpack.c.b16 %v377, %v374
    %v447 = vpack.c.b16 %v378, %v375
    %v448 = vpack.c.b16 %v379, %v376
    %v449 = vpack.c.b16 %v383, %v380
    %v450 = vpack.c.b16 %v384, %v381
    %v451 = vpack.c.b16 %v385, %v382
    %v452 = vpack.c.b16 %v389, %v386
    %v453 = vpack.c.b16 %v390, %v387
    %v454 = vpack.c.b16 %v391, %v388
    %v455 = vpack.c.b16 %v395, %v392
    %v456 = vpack.c.b16 %v396, %v393
    %v457 = vpack.c.b16 %v397, %v394
    %v458 = vpack.c.b16 %v401, %v398
    %v459 = vpack.c.b16 %v402, %v399
    %v460 = vpack.c.b16 %v403, %v400
    %v461 = vpack.c.b16 %v407, %v404
    %v462 = vpack.c.b16 %v408, %v405
    %v463 = vpack.c.b16 %v409, %v406
    %v464 = vpack.c.b16 %v413, %v410
    %v465 = vpack.c.b16 %v414, %v411
    %v466 = vpack.c.b16 %v415, %v412
    %v467 = vpack.c.b16 %v419, %v416
    %v468 = vpack.c.b16 %v420, %v417
    %v469 = vpack.c.b16 %v421, %v418
    %518 = vmatpush.bf16.msra.mxu0 %v443
    %519 = vmatpush.bf16.msra.mxu0 %v440
    %520 = vmatpush.bf16.msra.mxu0 %v437
    %521 = vmatpush.bf16.msra.mxu0 %v434
    %522 = vmatpush.bf16.msra.mxu0 %v431
    %523 = vmatpush.bf16.msra.mxu0 %v428
    %524 = vmatpush.bf16.msra.mxu0 %v425
    %525 = vmatpush.bf16.msra.mxu0 %v422
    %526 = vmatmul.bf16.gmra.mxu0 %v188
    %v527 = vpop.f32.mrf.mxu0
    %v528 = vadd.f32 %v256, %v527
    %v529 = vpop.f32.mrf.mxu0
    %530 = vdwg.mxu0
    %531 = vmatpush.bf16.msra.mxu0 %v467
    %532 = vmatpush.bf16.msra.mxu0 %v464
    %533 = vmatpush.bf16.msra.mxu0 %v461
    %534 = vmatpush.bf16.msra.mxu0 %v458
    %535 = vmatpush.bf16.msra.mxu0 %v455
    %536 = vmatpush.bf16.msra.mxu0 %v452
    %537 = vmatpush.bf16.msra.mxu0 %v449
    %538 = vmatpush.bf16.msra.mxu0 %v446
    %539 = vmatmul.bf16.gmra.mxu0 %v189
    %v540 = vpop.f32.mrf.mxu0
    %v541 = vadd.f32 %v528, %v540
    %v542 = vpop.f32.mrf.mxu0
    %543 = vdwg.mxu0
    %544 = vmatpush.bf16.msra.mxu0 %v444
    %545 = vmatpush.bf16.msra.mxu0 %v441
    %546 = vmatpush.bf16.msra.mxu0 %v438
    %547 = vmatpush.bf16.msra.mxu0 %v435
    %548 = vmatpush.bf16.msra.mxu0 %v432
    %549 = vmatpush.bf16.msra.mxu0 %v429
    %550 = vmatpush.bf16.msra.mxu0 %v426
    %551 = vmatpush.bf16.msra.mxu0 %v423
    %552 = vmatmul.bf16.gmra.mxu0 %v188
    %v553 = vpop.f32.mrf.mxu0
    %v554 = vadd.f32 %v257, %v553
    %v555 = vpop.f32.mrf.mxu0
    %556 = vdwg.mxu0
    %557 = vmatpush.bf16.msra.mxu0 %v468
    %558 = vmatpush.bf16.msra.mxu0 %v465
    %559 = vmatpush.bf16.msra.mxu0 %v462
    %560 = vmatpush.bf16.msra.mxu0 %v459
    %561 = vmatpush.bf16.msra.mxu0 %v456
    %562 = vmatpush.bf16.msra.mxu0 %v453
    %563 = vmatpush.bf16.msra.mxu0 %v450
    %564 = vmatpush.bf16.msra.mxu0 %v447
    %565 = vmatmul.bf16.gmra.mxu0 %v189
    %v566 = vpop.f32.mrf.mxu0
    %v567 = vadd.f32 %v554, %v566
    %v568 = vpop.f32.mrf.mxu0
    %569 = vdwg.mxu0
    %570 = vmatpush.bf16.msra.mxu0 %v445
    %571 = vmatpush.bf16.msra.mxu0 %v442
    %572 = vmatpush.bf16.msra.mxu0 %v439
    %573 = vmatpush.bf16.msra.mxu0 %v436
    %574 = vmatpush.bf16.msra.mxu0 %v433
    %575 = vmatpush.bf16.msra.mxu0 %v430
    %576 = vmatpush.bf16.msra.mxu0 %v427
    %577 = vmatpush.bf16.msra.mxu0 %v424
    %578 = vmatmul.bf16.gmra.mxu0 %v188
    %v579 = vpop.f32.mrf.mxu0
    %v580 = vadd.f32 %v258, %v579
    %v581 = vpop.f32.mrf.mxu0
    %582 = vdwg.mxu0
    %583 = vmatpush.bf16.msra.mxu0 %v469
    %584 = vmatpush.bf16.msra.mxu0 %v466
    %585 = vmatpush.bf16.msra.mxu0 %v463
    %586 = vmatpush.bf16.msra.mxu0 %v460
    %587 = vmatpush.bf16.msra.mxu0 %v457
    %588 = vmatpush.bf16.msra.mxu0 %v454
    %589 = vmatpush.bf16.msra.mxu0 %v451
    %590 = vmatpush.bf16.msra.mxu0 %v448
    %591 = vmatmul.bf16.gmra.mxu0 %v189
    %v592 = vpop.f32.mrf.mxu0
    %v593 = vadd.f32 %v580, %v592
    %v594 = vpop.f32.mrf.mxu0
    %595 = vdwg.mxu0
    %v596 = vmax.f32 %v541, 0.0
    %v597 = vmax.f32 %v567, 0.0
    %v598 = vmax.f32 %v593, 0.0
    %v599 = vpack.c.bf16 %v596, %v596
    %v600 = vpack.c.bf16 %v597, %v597
    %v601 = vpack.c.bf16 %v598, %v598
    %v602 = vld [vmem:[#allocation11] sm:$0xff]
    %v603 = vld [vmem:[#allocation11 + $0x8] sm:$0xff]
    %v604 = vld [vmem:[#allocation11 + $0x10] sm:$0xff]
    %v605 = vld [vmem:[#allocation11 + $0x18] sm:$0xff]
    %v606 = vld [vmem:[#allocation11 + $0x20] sm:$0xff]
    %v607 = vld [vmem:[#allocation11 + $0x28] sm:$0xff]
    %v608 = vld [vmem:[#allocation11 + $0x30] sm:$0xff]
    %v609 = vld [vmem:[#allocation11 + $0x38] sm:$0xff]
    %v610 = vld [vmem:[#allocation11 + $0x40] sm:$0xff]
    %v611 = vld [vmem:[#allocation11 + $0x48] sm:$0xff]
    %v612 = vld [vmem:[#allocation11 + $0x50] sm:$0xff]
    %v613 = vld [vmem:[#allocation11 + $0x58] sm:$0xff]
    %v614 = vld [vmem:[#allocation11 + $0x60] sm:$0xff]
    %v615 = vld [vmem:[#allocation11 + $0x68] sm:$0xff]
    %v616 = vld [vmem:[#allocation11 + $0x70] sm:$0xff]
    %v617 = vld [vmem:[#allocation11 + $0x78] sm:$0xff]
    %v618 = vld [vmem:[#allocation11 + $0x80] sm:$0xff]
    %v619 = vld [vmem:[#allocation11 + $0x88] sm:$0xff]
    %v620 = vld [vmem:[#allocation11 + $0x90] sm:$0xff]
    %v621 = vld [vmem:[#allocation11 + $0x98] sm:$0xff]
    %v622 = vld [vmem:[#allocation11 + $0xa0] sm:$0xff]
    %v623 = vld [vmem:[#allocation11 + $0xa8] sm:$0xff]
    %v624 = vld [vmem:[#allocation11 + $0xb0] sm:$0xff]
    %v625 = vld [vmem:[#allocation11 + $0xb8] sm:$0xff]
    %v626 = vld [vmem:[#allocation11 + $0xc0] sm:$0xff]
    %v627 = vld [vmem:[#allocation11 + $0xc8] sm:$0xff]
    %v628 = vld [vmem:[#allocation11 + $0xd0] sm:$0xff]
    %v629 = vld [vmem:[#allocation11 + $0xd8] sm:$0xff]
    %v630 = vld [vmem:[#allocation11 + $0xe0] sm:$0xff]
    %v631 = vld [vmem:[#allocation11 + $0xe8] sm:$0xff]
    %v632 = vld [vmem:[#allocation11 + $0xf0] sm:$0xff]
    %v633 = vld [vmem:[#allocation11 + $0xf8] sm:$0xff]
    %v634 = vld [vmem:[#allocation11 + $0x100] sm:$0xff]
    %v635 = vld [vmem:[#allocation11 + $0x108] sm:$0xff]
    %v636 = vld [vmem:[#allocation11 + $0x110] sm:$0xff]
    %v637 = vld [vmem:[#allocation11 + $0x118] sm:$0xff]
    %v638 = vld [vmem:[#allocation11 + $0x120] sm:$0xff]
    %v639 = vld [vmem:[#allocation11 + $0x128] sm:$0xff]
    %v640 = vld [vmem:[#allocation11 + $0x130] sm:$0xff]
    %v641 = vld [vmem:[#allocation11 + $0x138] sm:$0xff]
    %v642 = vld [vmem:[#allocation11 + $0x140] sm:$0xff]
    %v643 = vld [vmem:[#allocation11 + $0x148] sm:$0xff]
    %v644 = vld [vmem:[#allocation11 + $0x150] sm:$0xff]
    %v645 = vld [vmem:[#allocation11 + $0x158] sm:$0xff]
    %v646 = vld [vmem:[#allocation11 + $0x160] sm:$0xff]
    %v647 = vld [vmem:[#allocation11 + $0x168] sm:$0xff]
    %v648 = vld [vmem:[#allocation11 + $0x170] sm:$0xff]
    %v649 = vld [vmem:[#allocation11 + $0x178] sm:$0xff]
    %v650 = vld [vmem:[#allocation11 + $0x180] sm:$0xff]
    %v651 = vld [vmem:[#allocation11 + $0x188] sm:$0xff]
    %v652 = vld [vmem:[#allocation11 + $0x190] sm:$0xff]
    %v653 = vld [vmem:[#allocation11 + $0x198] sm:$0xff]
    %v654 = vld [vmem:[#allocation11 + $0x1a0] sm:$0xff]
    %v655 = vld [vmem:[#allocation11 + $0x1a8] sm:$0xff]
    %v656 = vld [vmem:[#allocation11 + $0x1b0] sm:$0xff]
    %v657 = vld [vmem:[#allocation11 + $0x1b8] sm:$0xff]
    %v658 = vld [vmem:[#allocation11 + $0x1c0] sm:$0xff]
    %v659 = vld [vmem:[#allocation11 + $0x1c8] sm:$0xff]
    %v660 = vld [vmem:[#allocation11 + $0x1d0] sm:$0xff]
    %v661 = vld [vmem:[#allocation11 + $0x1d8] sm:$0xff]
    %v662 = vld [vmem:[#allocation11 + $0x1e0] sm:$0xff]
    %v663 = vld [vmem:[#allocation11 + $0x1e8] sm:$0xff]
    %v664 = vld [vmem:[#allocation11 + $0x1f0] sm:$0xff]
    %v665 = vld [vmem:[#allocation11 + $0x1f8] sm:$0xff]
    %v666 = vld [vmem:[#allocation11 + $0x200] sm:$0xff]
    %v667 = vld [vmem:[#allocation11 + $0x208] sm:$0xff]
    %v668 = vld [vmem:[#allocation11 + $0x210] sm:$0xff]
    %v669 = vld [vmem:[#allocation11 + $0x218] sm:$0xff]
    %v670 = vld [vmem:[#allocation11 + $0x220] sm:$0xff]
    %v671 = vld [vmem:[#allocation11 + $0x228] sm:$0xff]
    %v672 = vld [vmem:[#allocation11 + $0x230] sm:$0xff]
    %v673 = vld [vmem:[#allocation11 + $0x238] sm:$0xff]
    %v674 = vld [vmem:[#allocation11 + $0x240] sm:$0xff]
    %v675 = vld [vmem:[#allocation11 + $0x248] sm:$0xff]
    %v676 = vld [vmem:[#allocation11 + $0x250] sm:$0xff]
    %v677 = vld [vmem:[#allocation11 + $0x258] sm:$0xff]
    %v678 = vld [vmem:[#allocation11 + $0x260] sm:$0xff]
    %v679 = vld [vmem:[#allocation11 + $0x268] sm:$0xff]
    %v680 = vld [vmem:[#allocation11 + $0x270] sm:$0xff]
    %v681 = vld [vmem:[#allocation11 + $0x278] sm:$0xff]
    %v682 = vld [vmem:[#allocation11 + $0x280] sm:$0xff]
    %v683 = vld [vmem:[#allocation11 + $0x288] sm:$0xff]
    %v684 = vld [vmem:[#allocation11 + $0x290] sm:$0xff]
    %v685 = vld [vmem:[#allocation11 + $0x298] sm:$0xff]
    %v686 = vld [vmem:[#allocation11 + $0x2a0] sm:$0xff]
    %v687 = vld [vmem:[#allocation11 + $0x2a8] sm:$0xff]
    %v688 = vld [vmem:[#allocation11 + $0x2b0] sm:$0xff]
    %v689 = vld [vmem:[#allocation11 + $0x2b8] sm:$0xff]
    %v690 = vld [vmem:[#allocation11 + $0x2c0] sm:$0xff]
    %v691 = vld [vmem:[#allocation11 + $0x2c8] sm:$0xff]
    %v692 = vld [vmem:[#allocation11 + $0x2d0] sm:$0xff]
    %v693 = vld [vmem:[#allocation11 + $0x2d8] sm:$0xff]
    %v694 = vld [vmem:[#allocation11 + $0x2e0] sm:$0xff]
    %v695 = vld [vmem:[#allocation11 + $0x2e8] sm:$0xff]
    %v696 = vld [vmem:[#allocation11 + $0x2f0] sm:$0xff]
    %v697 = vld [vmem:[#allocation11 + $0x2f8] sm:$0xff]
    %v698 = vld [vmem:[%s6] sm:$0xf]
    %v700 = vperm.slane %v698, 0
    %v701 = vperm.slane %v698, 1
    %v702 = vperm.slane %v698, 2
    %v703 = vperm.slane %v698, 3
    %v804 = vunpack.c.l.b16 %v602
    %v805 = vunpack.c.h.b16 %v602
    %v806 = vunpack.c.l.b16 %v603
    %v807 = vunpack.c.h.b16 %v603
    %v808 = vunpack.c.l.b16 %v604
    %v809 = vunpack.c.h.b16 %v604
    %v810 = vunpack.c.l.b16 %v605
    %v811 = vunpack.c.h.b16 %v605
    %v812 = vunpack.c.l.b16 %v606
    %v813 = vunpack.c.h.b16 %v606
    %v814 = vunpack.c.l.b16 %v607
    %v815 = vunpack.c.h.b16 %v607
    %v816 = vunpack.c.l.b16 %v608
    %v817 = vunpack.c.h.b16 %v608
    %v818 = vunpack.c.l.b16 %v609
    %v819 = vunpack.c.h.b16 %v609
    %v820 = vunpack.c.l.b16 %v610
    %v821 = vunpack.c.h.b16 %v610
    %v822 = vunpack.c.l.b16 %v611
    %v823 = vunpack.c.h.b16 %v611
    %v824 = vunpack.c.l.b16 %v612
    %v825 = vunpack.c.h.b16 %v612
    %v826 = vunpack.c.l.b16 %v613
    %v827 = vunpack.c.h.b16 %v613
    %v828 = vunpack.c.l.b16 %v614
    %v829 = vunpack.c.h.b16 %v614
    %v830 = vunpack.c.l.b16 %v615
    %v831 = vunpack.c.h.b16 %v615
    %v832 = vunpack.c.l.b16 %v616
    %v833 = vunpack.c.h.b16 %v616
    %v834 = vunpack.c.l.b16 %v617
    %v835 = vunpack.c.h.b16 %v617
    %v836 = vunpack.c.l.b16 %v618
    %v837 = vunpack.c.h.b16 %v618
    %v838 = vunpack.c.l.b16 %v619
    %v839 = vunpack.c.h.b16 %v619
    %v840 = vunpack.c.l.b16 %v620
    %v841 = vunpack.c.h.b16 %v620
    %v842 = vunpack.c.l.b16 %v621
    %v843 = vunpack.c.h.b16 %v621
    %v844 = vunpack.c.l.b16 %v622
    %v845 = vunpack.c.h.b16 %v622
    %v846 = vunpack.c.l.b16 %v623
    %v847 = vunpack.c.h.b16 %v623
    %v848 = vunpack.c.l.b16 %v624
    %v849 = vunpack.c.h.b16 %v624
    %v850 = vunpack.c.l.b16 %v625
    %v851 = vunpack.c.h.b16 %v625
    %v852 = vunpack.c.l.b16 %v626
    %v853 = vunpack.c.h.b16 %v626
    %v854 = vunpack.c.l.b16 %v627
    %v855 = vunpack.c.h.b16 %v627
    %v856 = vunpack.c.l.b16 %v628
    %v857 = vunpack.c.h.b16 %v628
    %v858 = vunpack.c.l.b16 %v629
    %v859 = vunpack.c.h.b16 %v629
    %v860 = vunpack.c.l.b16 %v630
    %v861 = vunpack.c.h.b16 %v630
    %v862 = vunpack.c.l.b16 %v631
    %v863 = vunpack.c.h.b16 %v631
    %v864 = vunpack.c.l.b16 %v632
    %v865 = vunpack.c.h.b16 %v632
    %v866 = vunpack.c.l.b16 %v633
    %v867 = vunpack.c.h.b16 %v633
    %v868 = vunpack.c.l.b16 %v634
    %v869 = vunpack.c.h.b16 %v634
    %v870 = vunpack.c.l.b16 %v635
    %v871 = vunpack.c.h.b16 %v635
    %v872 = vunpack.c.l.b16 %v636
    %v873 = vunpack.c.h.b16 %v636
    %v874 = vunpack.c.l.b16 %v637
    %v875 = vunpack.c.h.b16 %v637
    %v876 = vunpack.c.l.b16 %v638
    %v877 = vunpack.c.h.b16 %v638
    %v878 = vunpack.c.l.b16 %v639
    %v879 = vunpack.c.h.b16 %v639
    %v880 = vunpack.c.l.b16 %v640
    %v881 = vunpack.c.h.b16 %v640
    %v882 = vunpack.c.l.b16 %v641
    %v883 = vunpack.c.h.b16 %v641
    %v884 = vunpack.c.l.b16 %v642
    %v885 = vunpack.c.h.b16 %v642
    %v886 = vunpack.c.l.b16 %v643
    %v887 = vunpack.c.h.b16 %v643
    %v888 = vunpack.c.l.b16 %v644
    %v889 = vunpack.c.h.b16 %v644
    %v890 = vunpack.c.l.b16 %v645
    %v891 = vunpack.c.h.b16 %v645
    %v892 = vunpack.c.l.b16 %v646
    %v893 = vunpack.c.h.b16 %v646
    %v894 = vunpack.c.l.b16 %v647
    %v895 = vunpack.c.h.b16 %v647
    %v896 = vunpack.c.l.b16 %v648
    %v897 = vunpack.c.h.b16 %v648
    %v898 = vunpack.c.l.b16 %v649
    %v899 = vunpack.c.h.b16 %v649
    %v900 = vunpack.c.l.b16 %v650
    %v901 = vunpack.c.h.b16 %v650
    %v902 = vunpack.c.l.b16 %v651
    %v903 = vunpack.c.h.b16 %v651
    %v904 = vunpack.c.l.b16 %v652
    %v905 = vunpack.c.h.b16 %v652
    %v906 = vunpack.c.l.b16 %v653
    %v907 = vunpack.c.h.b16 %v653
    %v908 = vunpack.c.l.b16 %v654
    %v909 = vunpack.c.h.b16 %v654
    %v910 = vunpack.c.l.b16 %v655
    %v911 = vunpack.c.h.b16 %v655
    %v912 = vunpack.c.l.b16 %v656
    %v913 = vunpack.c.h.b16 %v656
    %v914 = vunpack.c.l.b16 %v657
    %v915 = vunpack.c.h.b16 %v657
    %v916 = vunpack.c.l.b16 %v658
    %v917 = vunpack.c.h.b16 %v658
    %v918 = vunpack.c.l.b16 %v659
    %v919 = vunpack.c.h.b16 %v659
    %v920 = vunpack.c.l.b16 %v660
    %v921 = vunpack.c.h.b16 %v660
    %v922 = vunpack.c.l.b16 %v661
    %v923 = vunpack.c.h.b16 %v661
    %v924 = vunpack.c.l.b16 %v662
    %v925 = vunpack.c.h.b16 %v662
    %v926 = vunpack.c.l.b16 %v663
    %v927 = vunpack.c.h.b16 %v663
    %v928 = vunpack.c.l.b16 %v664
    %v929 = vunpack.c.h.b16 %v664
    %v930 = vunpack.c.l.b16 %v665
    %v931 = vunpack.c.h.b16 %v665
    %v932 = vunpack.c.l.b16 %v666
    %v933 = vunpack.c.h.b16 %v666
    %v934 = vunpack.c.l.b16 %v667
    %v935 = vunpack.c.h.b16 %v667
    %v936 = vunpack.c.l.b16 %v668
    %v937 = vunpack.c.h.b16 %v668
    %v938 = vunpack.c.l.b16 %v669
    %v939 = vunpack.c.h.b16 %v669
    %v940 = vunpack.c.l.b16 %v670
    %v941 = vunpack.c.h.b16 %v670
    %v942 = vunpack.c.l.b16 %v671
    %v943 = vunpack.c.h.b16 %v671
    %v944 = vunpack.c.l.b16 %v672
    %v945 = vunpack.c.h.b16 %v672
    %v946 = vunpack.c.l.b16 %v673
    %v947 = vunpack.c.h.b16 %v673
    %v948 = vunpack.c.l.b16 %v674
    %v949 = vunpack.c.h.b16 %v674
    %v950 = vunpack.c.l.b16 %v675
    %v951 = vunpack.c.h.b16 %v675
    %v952 = vunpack.c.l.b16 %v676
    %v953 = vunpack.c.h.b16 %v676
    %v954 = vunpack.c.l.b16 %v677
    %v955 = vunpack.c.h.b16 %v677
    %v956 = vunpack.c.l.b16 %v678
    %v957 = vunpack.c.h.b16 %v678
    %v958 = vunpack.c.l.b16 %v679
    %v959 = vunpack.c.h.b16 %v679
    %v960 = vunpack.c.l.b16 %v680
    %v961 = vunpack.c.h.b16 %v680
    %v962 = vunpack.c.l.b16 %v681
    %v963 = vunpack.c.h.b16 %v681
    %v964 = vunpack.c.l.b16 %v682
    %v965 = vunpack.c.h.b16 %v682
    %v966 = vunpack.c.l.b16 %v683
    %v967 = vunpack.c.h.b16 %v683
    %v968 = vunpack.c.l.b16 %v684
    %v969 = vunpack.c.h.b16 %v684
    %v970 = vunpack.c.l.b16 %v685
    %v971 = vunpack.c.h.b16 %v685
    %v972 = vunpack.c.l.b16 %v686
    %v973 = vunpack.c.h.b16 %v686
    %v974 = vunpack.c.l.b16 %v687
    %v975 = vunpack.c.h.b16 %v687
    %v976 = vunpack.c.l.b16 %v688
    %v977 = vunpack.c.h.b16 %v688
    %v978 = vunpack.c.l.b16 %v689
    %v979 = vunpack.c.h.b16 %v689
    %v980 = vunpack.c.l.b16 %v690
    %v981 = vunpack.c.h.b16 %v690
    %v982 = vunpack.c.l.b16 %v691
    %v983 = vunpack.c.h.b16 %v691
    %v984 = vunpack.c.l.b16 %v692
    %v985 = vunpack.c.h.b16 %v692
    %v986 = vunpack.c.l.b16 %v693
    %v987 = vunpack.c.h.b16 %v693
    %v988 = vunpack.c.l.b16 %v694
    %v989 = vunpack.c.h.b16 %v694
    %v990 = vunpack.c.l.b16 %v695
    %v991 = vunpack.c.h.b16 %v695
    %v992 = vunpack.c.l.b16 %v696
    %v993 = vunpack.c.h.b16 %v696
    %v994 = vunpack.c.l.b16 %v697
    %v995 = vunpack.c.h.b16 %v697
    %v996 = vpack.c.b16 %v808, %v804
    %v997 = vpack.c.b16 %v809, %v805
    %v998 = vpack.c.b16 %v810, %v806
    %v999 = vpack.c.b16 %v811, %v807
    %v1000 = vpack.c.b16 %v816, %v812
    %v1001 = vpack.c.b16 %v817, %v813
    %v1002 = vpack.c.b16 %v818, %v814
    %v1003 = vpack.c.b16 %v819, %v815
    %v1004 = vpack.c.b16 %v824, %v820
    %v1005 = vpack.c.b16 %v825, %v821
    %v1006 = vpack.c.b16 %v826, %v822
    %v1007 = vpack.c.b16 %v827, %v823
    %v1008 = vpack.c.b16 %v832, %v828
    %v1009 = vpack.c.b16 %v833, %v829
    %v1010 = vpack.c.b16 %v834, %v830
    %v1011 = vpack.c.b16 %v835, %v831
    %v1012 = vpack.c.b16 %v840, %v836
    %v1013 = vpack.c.b16 %v841, %v837
    %v1014 = vpack.c.b16 %v842, %v838
    %v1015 = vpack.c.b16 %v843, %v839
    %v1016 = vpack.c.b16 %v848, %v844
    %v1017 = vpack.c.b16 %v849, %v845
    %v1018 = vpack.c.b16 %v850, %v846
    %v1019 = vpack.c.b16 %v851, %v847
    %v1020 = vpack.c.b16 %v856, %v852
    %v1021 = vpack.c.b16 %v857, %v853
    %v1022 = vpack.c.b16 %v858, %v854
    %v1023 = vpack.c.b16 %v859, %v855
    %v1024 = vpack.c.b16 %v864, %v860
    %v1025 = vpack.c.b16 %v865, %v861
    %v1026 = vpack.c.b16 %v866, %v862
    %v1027 = vpack.c.b16 %v867, %v863
    %v1028 = vpack.c.b16 %v872, %v868
    %v1029 = vpack.c.b16 %v873, %v869
    %v1030 = vpack.c.b16 %v874, %v870
    %v1031 = vpack.c.b16 %v875, %v871
    %v1032 = vpack.c.b16 %v880, %v876
    %v1033 = vpack.c.b16 %v881, %v877
    %v1034 = vpack.c.b16 %v882, %v878
    %v1035 = vpack.c.b16 %v883, %v879
    %v1036 = vpack.c.b16 %v888, %v884
    %v1037 = vpack.c.b16 %v889, %v885
    %v1038 = vpack.c.b16 %v890, %v886
    %v1039 = vpack.c.b16 %v891, %v887
    %v1040 = vpack.c.b16 %v896, %v892
    %v1041 = vpack.c.b16 %v897, %v893
    %v1042 = vpack.c.b16 %v898, %v894
    %v1043 = vpack.c.b16 %v899, %v895
    %v1044 = vpack.c.b16 %v904, %v900
    %v1045 = vpack.c.b16 %v905, %v901
    %v1046 = vpack.c.b16 %v906, %v902
    %v1047 = vpack.c.b16 %v907, %v903
    %v1048 = vpack.c.b16 %v912, %v908
    %v1049 = vpack.c.b16 %v913, %v909
    %v1050 = vpack.c.b16 %v914, %v910
    %v1051 = vpack.c.b16 %v915, %v911
    %v1052 = vpack.c.b16 %v920, %v916
    %v1053 = vpack.c.b16 %v921, %v917
    %v1054 = vpack.c.b16 %v922, %v918
    %v1055 = vpack.c.b16 %v923, %v919
    %v1056 = vpack.c.b16 %v928, %v924
    %v1057 = vpack.c.b16 %v929, %v925
    %v1058 = vpack.c.b16 %v930, %v926
    %v1059 = vpack.c.b16 %v931, %v927
    %v1060 = vpack.c.b16 %v936, %v932
    %v1061 = vpack.c.b16 %v937, %v933
    %v1062 = vpack.c.b16 %v938, %v934
    %v1063 = vpack.c.b16 %v939, %v935
    %v1064 = vpack.c.b16 %v944, %v940
    %v1065 = vpack.c.b16 %v945, %v941
    %v1066 = vpack.c.b16 %v946, %v942
    %v1067 = vpack.c.b16 %v947, %v943
    %v1068 = vpack.c.b16 %v952, %v948
    %v1069 = vpack.c.b16 %v953, %v949
    %v1070 = vpack.c.b16 %v954, %v950
    %v1071 = vpack.c.b16 %v955, %v951
    %v1072 = vpack.c.b16 %v960, %v956
    %v1073 = vpack.c.b16 %v961, %v957
    %v1074 = vpack.c.b16 %v962, %v958
    %v1075 = vpack.c.b16 %v963, %v959
    %v1076 = vpack.c.b16 %v968, %v964
    %v1077 = vpack.c.b16 %v969, %v965
    %v1078 = vpack.c.b16 %v970, %v966
    %v1079 = vpack.c.b16 %v971, %v967
    %v1080 = vpack.c.b16 %v976, %v972
    %v1081 = vpack.c.b16 %v977, %v973
    %v1082 = vpack.c.b16 %v978, %v974
    %v1083 = vpack.c.b16 %v979, %v975
    %v1084 = vpack.c.b16 %v984, %v980
    %v1085 = vpack.c.b16 %v985, %v981
    %v1086 = vpack.c.b16 %v986, %v982
    %v1087 = vpack.c.b16 %v987, %v983
    %v1088 = vpack.c.b16 %v992, %v988
    %v1089 = vpack.c.b16 %v993, %v989
    %v1090 = vpack.c.b16 %v994, %v990
    %v1091 = vpack.c.b16 %v995, %v991
    %1188 = vmatpush.bf16.msra.mxu0 %v1024
    %1189 = vmatpush.bf16.msra.mxu0 %v1020
    %1190 = vmatpush.bf16.msra.mxu0 %v1016
    %1191 = vmatpush.bf16.msra.mxu0 %v1012
    %1192 = vmatpush.bf16.msra.mxu0 %v1008
    %1193 = vmatpush.bf16.msra.mxu0 %v1004
    %1194 = vmatpush.bf16.msra.mxu0 %v1000
    %1195 = vmatpush.bf16.msra.mxu0 %v996
    %1196 = vmatmul.bf16.gmra.mxu0 %v599
    %v1197 = vpop.f32.mrf.mxu0
    %v1198 = vadd.f32 %v700, %v1197
    %v1199 = vpop.f32.mrf.mxu0
    %1200 = vdwg.mxu0
    %1201 = vmatpush.bf16.msra.mxu0 %v1056
    %1202 = vmatpush.bf16.msra.mxu0 %v1052
    %1203 = vmatpush.bf16.msra.mxu0 %v1048
    %1204 = vmatpush.bf16.msra.mxu0 %v1044
    %1205 = vmatpush.bf16.msra.mxu0 %v1040
    %1206 = vmatpush.bf16.msra.mxu0 %v1036
    %1207 = vmatpush.bf16.msra.mxu0 %v1032
    %1208 = vmatpush.bf16.msra.mxu0 %v1028
    %1209 = vmatmul.bf16.gmra.mxu0 %v600
    %v1210 = vpop.f32.mrf.mxu0
    %v1211 = vadd.f32 %v1198, %v1210
    %v1212 = vpop.f32.mrf.mxu0
    %1213 = vdwg.mxu0
    %1214 = vmatpush.bf16.msra.mxu0 %v1088
    %1215 = vmatpush.bf16.msra.mxu0 %v1084
    %1216 = vmatpush.bf16.msra.mxu0 %v1080
    %1217 = vmatpush.bf16.msra.mxu0 %v1076
    %1218 = vmatpush.bf16.msra.mxu0 %v1072
    %1219 = vmatpush.bf16.msra.mxu0 %v1068
    %1220 = vmatpush.bf16.msra.mxu0 %v1064
    %1221 = vmatpush.bf16.msra.mxu0 %v1060
    %1222 = vmatmul.bf16.gmra.mxu0 %v601
    %v1223 = vpop.f32.mrf.mxu0
    %v1224 = vadd.f32 %v1211, %v1223
    %v1225 = vpop.f32.mrf.mxu0
    %1226 = vdwg.mxu0
    %1227 = vmatpush.bf16.msra.mxu0 %v1025
    %1228 = vmatpush.bf16.msra.mxu0 %v1021
    %1229 = vmatpush.bf16.msra.mxu0 %v1017
    %1230 = vmatpush.bf16.msra.mxu0 %v1013
    %1231 = vmatpush.bf16.msra.mxu0 %v1009
    %1232 = vmatpush.bf16.msra.mxu0 %v1005
    %1233 = vmatpush.bf16.msra.mxu0 %v1001
    %1234 = vmatpush.bf16.msra.mxu0 %v997
    %1235 = vmatmul.bf16.gmra.mxu0 %v599
    %v1236 = vpop.f32.mrf.mxu0
    %v1237 = vadd.f32 %v701, %v1236
    %v1238 = vpop.f32.mrf.mxu0
    %1239 = vdwg.mxu0
    %1240 = vmatpush.bf16.msra.mxu0 %v1057
    %1241 = vmatpush.bf16.msra.mxu0 %v1053
    %1242 = vmatpush.bf16.msra.mxu0 %v1049
    %1243 = vmatpush.bf16.msra.mxu0 %v1045
    %1244 = vmatpush.bf16.msra.mxu0 %v1041
    %1245 = vmatpush.bf16.msra.mxu0 %v1037
    %1246 = vmatpush.bf16.msra.mxu0 %v1033
    %1247 = vmatpush.bf16.msra.mxu0 %v1029
    %1248 = vmatmul.bf16.gmra.mxu0 %v600
    %v1249 = vpop.f32.mrf.mxu0
    %v1250 = vadd.f32 %v1237, %v1249
    %v1251 = vpop.f32.mrf.mxu0
    %1252 = vdwg.mxu0
    %1253 = vmatpush.bf16.msra.mxu0 %v1089
    %1254 = vmatpush.bf16.msra.mxu0 %v1085
    %1255 = vmatpush.bf16.msra.mxu0 %v1081
    %1256 = vmatpush.bf16.msra.mxu0 %v1077
    %1257 = vmatpush.bf16.msra.mxu0 %v1073
    %1258 = vmatpush.bf16.msra.mxu0 %v1069
    %1259 = vmatpush.bf16.msra.mxu0 %v1065
    %1260 = vmatpush.bf16.msra.mxu0 %v1061
    %1261 = vmatmul.bf16.gmra.mxu0 %v601
    %v1262 = vpop.f32.mrf.mxu0
    %v1263 = vadd.f32 %v1250, %v1262
    %v1264 = vpop.f32.mrf.mxu0
    %1265 = vdwg.mxu0
    %1266 = vmatpush.bf16.msra.mxu0 %v1026
    %1267 = vmatpush.bf16.msra.mxu0 %v1022
    %1268 = vmatpush.bf16.msra.mxu0 %v1018
    %1269 = vmatpush.bf16.msra.mxu0 %v1014
    %1270 = vmatpush.bf16.msra.mxu0 %v1010
    %1271 = vmatpush.bf16.msra.mxu0 %v1006
    %1272 = vmatpush.bf16.msra.mxu0 %v1002
    %1273 = vmatpush.bf16.msra.mxu0 %v998
    %1274 = vmatmul.bf16.gmra.mxu0 %v599
    %v1275 = vpop.f32.mrf.mxu0
    %v1276 = vadd.f32 %v702, %v1275
    %v1277 = vpop.f32.mrf.mxu0
    %1278 = vdwg.mxu0
    %1279 = vmatpush.bf16.msra.mxu0 %v1058
    %1280 = vmatpush.bf16.msra.mxu0 %v1054
    %1281 = vmatpush.bf16.msra.mxu0 %v1050
    %1282 = vmatpush.bf16.msra.mxu0 %v1046
    %1283 = vmatpush.bf16.msra.mxu0 %v1042
    %1284 = vmatpush.bf16.msra.mxu0 %v1038
    %1285 = vmatpush.bf16.msra.mxu0 %v1034
    %1286 = vmatpush.bf16.msra.mxu0 %v1030
    %1287 = vmatmul.bf16.gmra.mxu0 %v600
    %v1288 = vpop.f32.mrf.mxu0
    %v1289 = vadd.f32 %v1276, %v1288
    %v1290 = vpop.f32.mrf.mxu0
    %1291 = vdwg.mxu0
    %1292 = vmatpush.bf16.msra.mxu0 %v1090
    %1293 = vmatpush.bf16.msra.mxu0 %v1086
    %1294 = vmatpush.bf16.msra.mxu0 %v1082
    %1295 = vmatpush.bf16.msra.mxu0 %v1078
    %1296 = vmatpush.bf16.msra.mxu0 %v1074
    %1297 = vmatpush.bf16.msra.mxu0 %v1070
    %1298 = vmatpush.bf16.msra.mxu0 %v1066
    %1299 = vmatpush.bf16.msra.mxu0 %v1062
    %1300 = vmatmul.bf16.gmra.mxu0 %v601
    %v1301 = vpop.f32.mrf.mxu0
    %v1302 = vadd.f32 %v1289, %v1301
    %v1303 = vpop.f32.mrf.mxu0
    %1304 = vdwg.mxu0
    %1305 = vmatpush.bf16.msra.mxu0 %v1027
    %1306 = vmatpush.bf16.msra.mxu0 %v1023
    %1307 = vmatpush.bf16.msra.mxu0 %v1019
    %1308 = vmatpush.bf16.msra.mxu0 %v1015
    %1309 = vmatpush.bf16.msra.mxu0 %v1011
    %1310 = vmatpush.bf16.msra.mxu0 %v1007
    %1311 = vmatpush.bf16.msra.mxu0 %v1003
    %1312 = vmatpush.bf16.msra.mxu0 %v999
    %1313 = vmatmul.bf16.gmra.mxu0 %v599
    %v1314 = vpop.f32.mrf.mxu0
    %v1315 = vadd.f32 %v703, %v1314
    %v1316 = vpop.f32.mrf.mxu0
    %1317 = vdwg.mxu0
    %1318 = vmatpush.bf16.msra.mxu0 %v1059
    %1319 = vmatpush.bf16.msra.mxu0 %v1055
    %1320 = vmatpush.bf16.msra.mxu0 %v1051
    %1321 = vmatpush.bf16.msra.mxu0 %v1047
    %1322 = vmatpush.bf16.msra.mxu0 %v1043
    %1323 = vmatpush.bf16.msra.mxu0 %v1039
    %1324 = vmatpush.bf16.msra.mxu0 %v1035
    %1325 = vmatpush.bf16.msra.mxu0 %v1031
    %1326 = vmatmul.bf16.gmra.mxu0 %v600
    %v1327 = vpop.f32.mrf.mxu0
    %v1328 = vadd.f32 %v1315, %v1327
    %v1329 = vpop.f32.mrf.mxu0
    %1330 = vdwg.mxu0
    %1331 = vmatpush.bf16.msra.mxu0 %v1091
    %1332 = vmatpush.bf16.msra.mxu0 %v1087
    %1333 = vmatpush.bf16.msra.mxu0 %v1083
    %1334 = vmatpush.bf16.msra.mxu0 %v1079
    %1335 = vmatpush.bf16.msra.mxu0 %v1075
    %1336 = vmatpush.bf16.msra.mxu0 %v1071
    %1337 = vmatpush.bf16.msra.mxu0 %v1067
    %1338 = vmatpush.bf16.msra.mxu0 %v1063
    %1339 = vmatmul.bf16.gmra.mxu0 %v601
    %v1340 = vpop.f32.mrf.mxu0
    %v1341 = vadd.f32 %v1328, %v1340
    %v1342 = vpop.f32.mrf.mxu0
    %1343 = vdwg.mxu0
    %v1344 = vmax.f32 %v1224, 0.0
    %v1345 = vmax.f32 %v1263, 0.0
    %v1346 = vmax.f32 %v1302, 0.0
    %v1347 = vmax.f32 %v1341, 0.0
    %v1348 = vpack.c.bf16 %v1344, %v1344
    %v1349 = vpack.c.bf16 %v1345, %v1345
    %v1350 = vpack.c.bf16 %v1346, %v1346
    %v1351 = vpack.c.bf16 %v1347, %v1347
    %v1352 = vld [vmem:[#allocation13] sm:$0xf]
    %v1353 = vld [vmem:[#allocation13 + $0x4] sm:$0xf]
    %v1354 = vld [vmem:[#allocation13 + $0x8] sm:$0xf]
    %v1355 = vld [vmem:[#allocation13 + $0xc] sm:$0xf]
    %v1356 = vld [vmem:[#allocation13 + $0x10] sm:$0xf]
    %v1357 = vld [vmem:[#allocation13 + $0x14] sm:$0xf]
    %v1358 = vld [vmem:[#allocation13 + $0x18] sm:$0xf]
    %v1359 = vld [vmem:[#allocation13 + $0x1c] sm:$0xf]
    %v1360 = vld [vmem:[#allocation13 + $0x20] sm:$0xf]
    %v1361 = vld [vmem:[#allocation13 + $0x24] sm:$0xf]
    %v1362 = vld [vmem:[#allocation13 + $0x28] sm:$0xf]
    %v1363 = vld [vmem:[#allocation13 + $0x2c] sm:$0xf]
    %v1364 = vld [vmem:[#allocation13 + $0x30] sm:$0xf]
    %v1365 = vld [vmem:[#allocation13 + $0x34] sm:$0xf]
    %v1366 = vld [vmem:[#allocation13 + $0x38] sm:$0xf]
    %v1367 = vld [vmem:[#allocation13 + $0x3c] sm:$0xf]
    %v1368 = vld [vmem:[#allocation13 + $0x40] sm:$0xf]
    %v1369 = vld [vmem:[#allocation13 + $0x44] sm:$0xf]
    %v1370 = vld [vmem:[#allocation13 + $0x48] sm:$0xf]
    %v1371 = vld [vmem:[#allocation13 + $0x4c] sm:$0xf]
    %v1372 = vld [vmem:[#allocation13 + $0x50] sm:$0xf]
    %v1373 = vld [vmem:[#allocation13 + $0x54] sm:$0xf]
    %v1374 = vld [vmem:[#allocation13 + $0x58] sm:$0xf]
    %v1375 = vld [vmem:[#allocation13 + $0x5c] sm:$0xf]
    %v1376 = vld [vmem:[#allocation13 + $0x60] sm:$0xf]
    %v1377 = vld [vmem:[#allocation13 + $0x64] sm:$0xf]
    %v1378 = vld [vmem:[#allocation13 + $0x68] sm:$0xf]
    %v1379 = vld [vmem:[#allocation13 + $0x6c] sm:$0xf]
    %v1380 = vld [vmem:[#allocation13 + $0x70] sm:$0xf]
    %v1381 = vld [vmem:[#allocation13 + $0x74] sm:$0xf]
    %v1382 = vld [vmem:[#allocation13 + $0x78] sm:$0xf]
    %v1383 = vld [vmem:[#allocation13 + $0x7c] sm:$0xf]
    %v1384 = vld [vmem:[#allocation13 + $0x80] sm:$0xf]
    %v1385 = vld [vmem:[#allocation13 + $0x84] sm:$0xf]
    %v1386 = vld [vmem:[#allocation13 + $0x88] sm:$0xf]
    %v1387 = vld [vmem:[#allocation13 + $0x8c] sm:$0xf]
    %v1388 = vld [vmem:[#allocation13 + $0x90] sm:$0xf]
    %v1389 = vld [vmem:[#allocation13 + $0x94] sm:$0xf]
    %v1390 = vld [vmem:[#allocation13 + $0x98] sm:$0xf]
    %v1391 = vld [vmem:[#allocation13 + $0x9c] sm:$0xf]
    %v1392 = vld [vmem:[#allocation13 + $0xa0] sm:$0xf]
    %v1393 = vld [vmem:[#allocation13 + $0xa4] sm:$0xf]
    %v1394 = vld [vmem:[#allocation13 + $0xa8] sm:$0xf]
    %v1395 = vld [vmem:[#allocation13 + $0xac] sm:$0xf]
    %v1396 = vld [vmem:[#allocation13 + $0xb0] sm:$0xf]
    %v1397 = vld [vmem:[#allocation13 + $0xb4] sm:$0xf]
    %v1398 = vld [vmem:[#allocation13 + $0xb8] sm:$0xf]
    %v1399 = vld [vmem:[#allocation13 + $0xbc] sm:$0xf]
    %v1400 = vld [vmem:[#allocation13 + $0xc0] sm:$0xf]
    %v1401 = vld [vmem:[#allocation13 + $0xc4] sm:$0xf]
    %v1402 = vld [vmem:[#allocation13 + $0xc8] sm:$0xf]
    %v1403 = vld [vmem:[#allocation13 + $0xcc] sm:$0xf]
    %v1404 = vld [vmem:[#allocation13 + $0xd0] sm:$0xf]
    %v1405 = vld [vmem:[#allocation13 + $0xd4] sm:$0xf]
    %v1406 = vld [vmem:[#allocation13 + $0xd8] sm:$0xf]
    %v1407 = vld [vmem:[#allocation13 + $0xdc] sm:$0xf]
    %v1408 = vld [vmem:[#allocation13 + $0xe0] sm:$0xf]
    %v1409 = vld [vmem:[#allocation13 + $0xe4] sm:$0xf]
    %v1410 = vld [vmem:[#allocation13 + $0xe8] sm:$0xf]
    %v1411 = vld [vmem:[#allocation13 + $0xec] sm:$0xf]
    %v1412 = vld [vmem:[#allocation13 + $0xf0] sm:$0xf]
    %v1413 = vld [vmem:[#allocation13 + $0xf4] sm:$0xf]
    %v1414 = vld [vmem:[#allocation13 + $0xf8] sm:$0xf]
    %v1415 = vld [vmem:[#allocation13 + $0xfc] sm:$0xf]
    %v1416 = vld [vmem:[%s8] sm:$0x1]
    %v1418 = vperm.slane %v1416, 0
    %v1484 = vunpack.c.l.b16 %v1352
    %v1485 = vunpack.c.l.b16 %v1353
    %v1486 = vunpack.c.l.b16 %v1354
    %v1487 = vunpack.c.l.b16 %v1355
    %v1488 = vunpack.c.l.b16 %v1356
    %v1489 = vunpack.c.l.b16 %v1357
    %v1490 = vunpack.c.l.b16 %v1358
    %v1491 = vunpack.c.l.b16 %v1359
    %v1492 = vunpack.c.l.b16 %v1360
    %v1493 = vunpack.c.l.b16 %v1361
    %v1494 = vunpack.c.l.b16 %v1362
    %v1495 = vunpack.c.l.b16 %v1363
    %v1496 = vunpack.c.l.b16 %v1364
    %v1497 = vunpack.c.l.b16 %v1365
    %v1498 = vunpack.c.l.b16 %v1366
    %v1499 = vunpack.c.l.b16 %v1367
    %v1500 = vunpack.c.l.b16 %v1368
    %v1501 = vunpack.c.l.b16 %v1369
    %v1502 = vunpack.c.l.b16 %v1370
    %v1503 = vunpack.c.l.b16 %v1371
    %v1504 = vunpack.c.l.b16 %v1372
    %v1505 = vunpack.c.l.b16 %v1373
    %v1506 = vunpack.c.l.b16 %v1374
    %v1507 = vunpack.c.l.b16 %v1375
    %v1508 = vunpack.c.l.b16 %v1376
    %v1509 = vunpack.c.l.b16 %v1377
    %v1510 = vunpack.c.l.b16 %v1378
    %v1511 = vunpack.c.l.b16 %v1379
    %v1512 = vunpack.c.l.b16 %v1380
    %v1513 = vunpack.c.l.b16 %v1381
    %v1514 = vunpack.c.l.b16 %v1382
    %v1515 = vunpack.c.l.b16 %v1383
    %v1516 = vunpack.c.l.b16 %v1384
    %v1517 = vunpack.c.l.b16 %v1385
    %v1518 = vunpack.c.l.b16 %v1386
    %v1519 = vunpack.c.l.b16 %v1387
    %v1520 = vunpack.c.l.b16 %v1388
    %v1521 = vunpack.c.l.b16 %v1389
    %v1522 = vunpack.c.l.b16 %v1390
    %v1523 = vunpack.c.l.b16 %v1391
    %v1524 = vunpack.c.l.b16 %v1392
    %v1525 = vunpack.c.l.b16 %v1393
    %v1526 = vunpack.c.l.b16 %v1394
    %v1527 = vunpack.c.l.b16 %v1395
    %v1528 = vunpack.c.l.b16 %v1396
    %v1529 = vunpack.c.l.b16 %v1397
    %v1530 = vunpack.c.l.b16 %v1398
    %v1531 = vunpack.c.l.b16 %v1399
    %v1532 = vunpack.c.l.b16 %v1400
    %v1533 = vunpack.c.l.b16 %v1401
    %v1534 = vunpack.c.l.b16 %v1402
    %v1535 = vunpack.c.l.b16 %v1403
    %v1536 = vunpack.c.l.b16 %v1404
    %v1537 = vunpack.c.l.b16 %v1405
    %v1538 = vunpack.c.l.b16 %v1406
    %v1539 = vunpack.c.l.b16 %v1407
    %v1540 = vunpack.c.l.b16 %v1408
    %v1541 = vunpack.c.l.b16 %v1409
    %v1542 = vunpack.c.l.b16 %v1410
    %v1543 = vunpack.c.l.b16 %v1411
    %v1544 = vunpack.c.l.b16 %v1412
    %v1545 = vunpack.c.l.b16 %v1413
    %v1546 = vunpack.c.l.b16 %v1414
    %v1547 = vunpack.c.l.b16 %v1415
    %v1548 = vpack.c.b16 %v1485, %v1484
    %v1549 = vpack.c.b16 %v1487, %v1486
    %v1550 = vpack.c.b16 %v1489, %v1488
    %v1551 = vpack.c.b16 %v1491, %v1490
    %v1552 = vpack.c.b16 %v1493, %v1492
    %v1553 = vpack.c.b16 %v1495, %v1494
    %v1554 = vpack.c.b16 %v1497, %v1496
    %v1555 = vpack.c.b16 %v1499, %v1498
    %v1556 = vpack.c.b16 %v1501, %v1500
    %v1557 = vpack.c.b16 %v1503, %v1502
    %v1558 = vpack.c.b16 %v1505, %v1504
    %v1559 = vpack.c.b16 %v1507, %v1506
    %v1560 = vpack.c.b16 %v1509, %v1508
    %v1561 = vpack.c.b16 %v1511, %v1510
    %v1562 = vpack.c.b16 %v1513, %v1512
    %v1563 = vpack.c.b16 %v1515, %v1514
    %v1564 = vpack.c.b16 %v1517, %v1516
    %v1565 = vpack.c.b16 %v1519, %v1518
    %v1566 = vpack.c.b16 %v1521, %v1520
    %v1567 = vpack.c.b16 %v1523, %v1522
    %v1568 = vpack.c.b16 %v1525, %v1524
    %v1569 = vpack.c.b16 %v1527, %v1526
    %v1570 = vpack.c.b16 %v1529, %v1528
    %v1571 = vpack.c.b16 %v1531, %v1530
    %v1572 = vpack.c.b16 %v1533, %v1532
    %v1573 = vpack.c.b16 %v1535, %v1534
    %v1574 = vpack.c.b16 %v1537, %v1536
    %v1575 = vpack.c.b16 %v1539, %v1538
    %v1576 = vpack.c.b16 %v1541, %v1540
    %v1577 = vpack.c.b16 %v1543, %v1542
    %v1578 = vpack.c.b16 %v1545, %v1544
    %v1579 = vpack.c.b16 %v1547, %v1546
    %1612 = vmatpush.bf16.msra.mxu0 %v1555
    %1613 = vmatpush.bf16.msra.mxu0 %v1554
    %1614 = vmatpush.bf16.msra.mxu0 %v1553
    %1615 = vmatpush.bf16.msra.mxu0 %v1552
    %1616 = vmatpush.bf16.msra.mxu0 %v1551
    %1617 = vmatpush.bf16.msra.mxu0 %v1550
    %1618 = vmatpush.bf16.msra.mxu0 %v1549
    %1619 = vmatpush.bf16.msra.mxu0 %v1548
    %1620 = vmatmul.bf16.gmra.mxu0 %v1348
    %v1621 = vpop.f32.mrf.mxu0
    %v1622 = vadd.f32 %v1418, %v1621
    %v1623 = vpop.f32.mrf.mxu0
    %1624 = vdwg.mxu0
    %1625 = vmatpush.bf16.msra.mxu0 %v1563
    %1626 = vmatpush.bf16.msra.mxu0 %v1562
    %1627 = vmatpush.bf16.msra.mxu0 %v1561
    %1628 = vmatpush.bf16.msra.mxu0 %v1560
    %1629 = vmatpush.bf16.msra.mxu0 %v1559
    %1630 = vmatpush.bf16.msra.mxu0 %v1558
    %1631 = vmatpush.bf16.msra.mxu0 %v1557
    %1632 = vmatpush.bf16.msra.mxu0 %v1556
    %1633 = vmatmul.bf16.gmra.mxu0 %v1349
    %v1634 = vpop.f32.mrf.mxu0
    %v1635 = vadd.f32 %v1622, %v1634
    %v1636 = vpop.f32.mrf.mxu0
    %1637 = vdwg.mxu0
    %1638 = vmatpush.bf16.msra.mxu0 %v1571
    %1639 = vmatpush.bf16.msra.mxu0 %v1570
    %1640 = vmatpush.bf16.msra.mxu0 %v1569
    %1641 = vmatpush.bf16.msra.mxu0 %v1568
    %1642 = vmatpush.bf16.msra.mxu0 %v1567
    %1643 = vmatpush.bf16.msra.mxu0 %v1566
    %1644 = vmatpush.bf16.msra.mxu0 %v1565
    %1645 = vmatpush.bf16.msra.mxu0 %v1564
    %1646 = vmatmul.bf16.gmra.mxu0 %v1350
    %v1647 = vpop.f32.mrf.mxu0
    %v1648 = vadd.f32 %v1635, %v1647
    %v1649 = vpop.f32.mrf.mxu0
    %1650 = vdwg.mxu0
    %1651 = vmatpush.bf16.msra.mxu0 %v1579
    %1652 = vmatpush.bf16.msra.mxu0 %v1578
    %1653 = vmatpush.bf16.msra.mxu0 %v1577
    %1654 = vmatpush.bf16.msra.mxu0 %v1576
    %1655 = vmatpush.bf16.msra.mxu0 %v1575
    %1656 = vmatpush.bf16.msra.mxu0 %v1574
    %1657 = vmatpush.bf16.msra.mxu0 %v1573
    %1658 = vmatpush.bf16.msra.mxu0 %v1572
    %1659 = vmatmul.bf16.gmra.mxu0 %v1351
    %v1660 = vpop.f32.mrf.mxu0
    %v1661 = vadd.f32 %v1648, %v1660
    %v1662 = vpop.f32.mrf.mxu0
    %1663 = vdwg.mxu0
    %v1664 = vmax.f32 %v1661, 0.0
    %1665 = vst [vmem:[#allocation14] sm:$0xff] %v1664
    // Predicated region
    $region66: #{tpu_custom_call.1} parent=1 // pred_check
      _
    $region67: #{tpu_custom_call.1} parent=1 // pred_check_branch
      %1667 = sbr.rel (0) target = $region69
    $region68: #{tpu_custom_call.1} parent=1 // pred_region
      %1669 = vsyncadd [#allocation4], 0
      %s1671 = sshll.u32 [#allocation14], 4
      %s1672 = int_to_ptr.vmem [resolvable:$true] %s1671
      %s1673 = sshll.u32 %s9, 4
      %s1674 = int_to_ptr.hbm [resolvable:$true] %s1673
      %1676 = dma.vmem_to_hbm [thread:$0]  %s1672, 128, %s1674, [#allocation4]
    $region69: #{tpu_custom_call.1} parent=1 // pred_fallthru
      _
    // Predicated region
    $region70: #{tpu_custom_call.1} parent=1 // pred_check
      _
    $region71: #{tpu_custom_call.1} parent=1 // pred_check_branch
      %1678 = sbr.rel (0) target = $region73
    $region72: #{tpu_custom_call.1} parent=1 // pred_region
      %1680 = dma.done [#allocation4], 128
    $region73: #{tpu_custom_call.1} parent=1 // pred_fallthru
      _
    %1681 = vsyncpa [#allocation3], 1
    %1682 = vsyncpa [#allocation6], 1
    %1683 = vsyncpa [#allocation9], 1
    %1684 = vsyncpa [#allocation12], 1
    %1685 = vsyncpa [#allocation4], 1

</llo_original>
